<compile_context>
chip_gen: v7x
topology: tpu7x:2x2x1
jax: 0.10.0
libtpu: 0.0.40
codegen_flags: <defaults>
</compile_context>

<pallas_src>
import functools

import numpy as np
import jax
import jax.numpy as jnp
from jax.experimental import pallas as pl
from jax.experimental.pallas import tpu as pltpu


def _round_up(v, m):
    return ((v + m - 1) // m) * m


# ---------------------------------------------------------------------------
# Fused Pallas kernel:  N x (data re-uploading circuit) -> PauliZ expvals
#                       -> linear_up       (stacked real/imag formulation)
# ---------------------------------------------------------------------------
def qiddm_fused_kernel(theta_ref, bsh2_ref, ucol2_ref, u2s_ref,
                       zsign2_ref, zw2_ref, b_up_ref, o_ref,
                       *, n_reps, n_layers, tb, S, D_pad):
    # theta:  (tb, n_q)        encoding angles (PCA-reduced features)
    # bsh2:   (n_q, 2S)        [-0.5*bsign^T | 0.5*bsign^T]  (scale folded in)
    # ucol2:  (N, 1, 2S)       stacked first column of U_{rep,0}  (state after
    #                          the first entangle block; first RZ layer is a
    #                          global phase on |0..0> and is dropped)
    # u2s:    (n_mat, 2S, 2S)  [[Re U^T, Im U^T], [-Im U^T, Re U^T]], layer>=1
    # zsign2: (2S, n_q)        stacked PauliZ eigenvalue table
    # zw2:    (2S, D_pad)      stacked (zsign @ W_up^T), zero-padded to D_pad
    # b_up:   (1, D_pad)       bias, zero-padded to D_pad
    f32 = jnp.float32
    theta = theta_ref[...]                       # (tb, n_q)
    bsh2 = bsh2_ref[...]                         # (n_q, 2S)
    zsign2 = zsign2_ref[...]                     # (2S, n_q)

    out = None
    for rep in range(n_reps):                    # N re-uploading repetitions
        # layer 0: RZ on |0..0> is a global phase -> psi = U_{rep,0}[:, 0]
        psi = ucol2_ref[rep]                     # (1, 2S) = [re | im]
        if n_layers > 1:
            # the SAME angles are re-uploaded at every layer -> compute once;
            # d1 = [cos|cos], d2 = [-sin|sin] via the sign-stacked bsh2 table
            ang = jnp.dot(theta, bsh2, preferred_element_type=f32)   # (tb, 2S)
            d1 = jnp.cos(ang)
            d2 = jnp.sin(ang)
            for layer in range(1, n_layers):
                # diagonal RZ phase in stacked form (complex elementwise mult)
                psi_swap = jnp.concatenate([psi[:, S:], psi[:, :S]], axis=-1)
                t = d1 * psi + d2 * psi_swap                         # (tb, 2S)
                k = rep * (n_layers - 1) + (layer - 1)
                # psi <- U @ psi : ONE real matmul on the stacked state
                psi = jnp.dot(t, u2s_ref[k], preferred_element_type=f32)
        sq = psi * psi                           # [re^2 | im^2]
        if rep < n_reps - 1:
            # <Z_j> = probs @ zsign  ==  sq @ [[zsign],[zsign]]
            theta = jnp.dot(sq, zsign2, preferred_element_type=f32)
        else:
            # fused readout + linear_up:  probs @ (zsign @ W_up^T) + b
            out = (jnp.dot(sq, zw2_ref[...], preferred_element_type=f32)
                   + b_up_ref[...])
    # broadcast handles the L == 1 (input-independent state) case
    o_ref[...] = jnp.broadcast_to(out, (tb, D_pad))


# ---------------------------------------------------------------------------
# Host-side setup (glue, plain numpy): StronglyEntanglingLayers unitaries
# ---------------------------------------------------------------------------
def _rot_matrix(phi, theta, omega):
    # PennyLane Rot(phi, theta, omega) = RZ(omega) @ RY(theta) @ RZ(phi)
    c = np.cos(theta / 2.0)
    s = np.sin(theta / 2.0)
    return np.array(
        [[np.exp(-0.5j * (phi + omega)) * c, -np.exp(0.5j * (phi - omega)) * s],
         [np.exp(0.5j * (omega - phi)) * s, np.exp(0.5j * (phi + omega)) * c]],
        dtype=np.complex128)


def _bit(s, j, n):
    # wire 0 is most-significant bit (PennyLane convention)
    return (s >> (n - 1 - j)) & 1


def build_strongly_entangling_unitary(weights, n_wires):
    # weights: (qdepth, n_wires, 3).  Imprimitive = CZ.
    qdepth = weights.shape[0]
    S = 2 ** n_wires
    U = np.eye(S, dtype=np.complex128)
    for l in range(qdepth):
        layer = _rot_matrix(*weights[l, 0])
        for j in range(1, n_wires):
            layer = np.kron(layer, _rot_matrix(*weights[l, j]))
        U = layer @ U
        if n_wires > 1:
            r = (l % (n_wires - 1)) + 1
            diag = np.ones(S, dtype=np.complex128)
            for j in range(n_wires):
                a, b = j, (j + r) % n_wires
                for s in range(S):
                    if _bit(s, a, n_wires) and _bit(s, b, n_wires):
                        diag[s] *= -1.0
            U = np.diag(diag) @ U
    return U


def build_bsign(n_wires):
    S = 2 ** n_wires
    bs = np.zeros((S, n_wires), dtype=np.float64)
    for s in range(S):
        for j in range(n_wires):
            bs[s, j] = 2.0 * _bit(s, j, n_wires) - 1.0
    return bs


# ---------------------------------------------------------------------------
# Model
# ---------------------------------------------------------------------------
class QIDDMPallas:
    def __init__(self, input_dim, hidden_features, spectrum_layer, N, key):
        self.input_dim = input_dim
        self.n_q = hidden_features
        self.L = spectrum_layer
        self.N = N
        self.S = 2 ** hidden_features
        S, n_q, D = self.S, self.n_q, input_dim
        self.D_pad = _round_up(max(D, 128), 128)   # lane-dense output blocks

        k1, k2, k3 = jax.random.split(key, 3)
        # nn.Linear(hidden_features, input_dim) default init
        bound = 1.0 / np.sqrt(hidden_features)
        w_up = np.asarray(
            jax.random.uniform(k1, (D, n_q), jnp.float32, -bound, bound),
            dtype=np.float64)
        b_up = np.asarray(
            jax.random.uniform(k2, (D,), jnp.float32, -bound, bound),
            dtype=np.float64)
        # weights1: (N, L, 2, n_q, 3) ~ 0.4 * randn  (qdepth 2 per entangle block)
        q_w = np.asarray(
            jax.random.normal(k3, (N, spectrum_layer, 2, n_q, 3), jnp.float32),
            dtype=np.float64) * 0.4

        # ---- constants laid out ONCE (hoisted out of forward) ----
        u_full = np.zeros((N, spectrum_layer, S, S), dtype=np.complex128)
        for rep in range(N):
            for layer in range(spectrum_layer):
                u_full[rep, layer] = build_strongly_entangling_unitary(
                    q_w[rep, layer], n_q)
        self._u_full = u_full  # complex128, host-only: exact reference check

        bsign = build_bsign(n_q)                                  # (S, n_q)
        zsign = -bsign                                            # PauliZ eigvals

        # sign-stacked half-angle table: ang2 = theta @ bsh2 -> cos: [c|c],
        # sin: [-s|s]  (0.5 scale folded in)
        bsh = 0.5 * bsign.T                                       # (n_q, S)
        bsh2 = np.concatenate([-bsh, bsh], axis=1)                # (n_q, 2S)
        self.bsh2 = jnp.asarray(bsh2, jnp.float32)

        # stacked initial state after the first entangle block of every rep
        ucol = u_full[:, 0, :, 0]                                 # (N, S)
        ucol2 = np.concatenate([ucol.real, ucol.imag], axis=1)
        self.ucol2 = jnp.asarray(ucol2.reshape(N, 1, 2 * S), jnp.float32)

        # stacked real (2S, 2S) matrices for U_{rep, layer}, layer >= 1
        if spectrum_layer > 1:
            mats = []
            for rep in range(N):
                for layer in range(1, spectrum_layer):
                    ut = u_full[rep, layer].T
                    mats.append(np.block([[ut.real, ut.imag],
                                          [-ut.imag, ut.real]]))
            u2s = np.stack(mats, axis=0)                          # (N*(L-1), 2S, 2S)
        else:
            u2s = np.eye(2 * S, dtype=np.float64)[None]           # unused dummy
        self.u2s = jnp.asarray(u2s, jnp.float32)

        # stacked intermediate readout and fused (readout + linear_up)
        self.zsign2 = jnp.asarray(np.concatenate([zsign, zsign], 0), jnp.float32)
        zw = zsign @ w_up.T                                       # (S, D)
        zw_pad = np.zeros((S, self.D_pad), dtype=np.float64)
        zw_pad[:, :D] = zw
        self.zw2 = jnp.asarray(np.concatenate([zw_pad, zw_pad], 0), jnp.float32)
        b_pad = np.zeros((1, self.D_pad), dtype=np.float64)
        b_pad[0, :D] = b_up
        self.b_up_pad = jnp.asarray(b_pad, jnp.float32)

        # host copies for the exact complex128 reference
        self._np_bsign = bsign
        self._np_zsign = zsign
        self._np_w_up_t = w_up.T                                  # (n_q, D)
        self._np_b_up = b_up                                      # (D,)

    # ---------------- glue: PCA (no Pallas equivalent) ----------------
    def _pca(self, x_flat):
        # TODO(synk): sklearn PCA.fit_transform (data-dependent SVD fit) done in
        # plain JAX; not expressible as a Pallas kernel.
        xc = x_flat - jnp.mean(x_flat, axis=0, keepdims=True)
        u, s, _ = jnp.linalg.svd(xc, full_matrices=False)
        # sklearn svd_flip sign convention
        max_idx = jnp.argmax(jnp.abs(u), axis=0)
        signs = jnp.sign(u[max_idx, jnp.arange(u.shape[1])])
        signs = jnp.where(signs == 0, 1.0, signs)
        u = u * signs[None, :]
        return (u[:, : self.n_q] * s[: self.n_q]).astype(jnp.float32)

    # ---------------- batch tiling ----------------
    def _pick_tile(self, B):
        if B <= 8:
            return 8
        # cap at ceil(B/2) (rounded to sublanes) so the grid has >= 2 steps and
        # v7x's second TensorCore gets work; cap at 256 (per-step VMEM < 1 MiB)
        return max(8, min(256, _round_up(pl.cdiv(B, 2), 8)))

    # ---------------- Pallas forward ----------------
    def forward(self, x):
        b, c, w, h = x.shape
        x_flat = x.reshape(b, -1).astype(jnp.float32)
        theta0 = self._pca(x_flat)                                # (b, n_q)

        B = theta0.shape[0]
        S, D_pad, n_q = self.S, self.D_pad, self.n_q
        N, L = self.N, self.L
        n_mat = self.u2s.shape[0]

        tb = self._pick_tile(B)
        B_pad = _round_up(B, tb)
        if B_pad > B:
            theta0 = jnp.pad(theta0, ((0, B_pad - B), (0, 0)))

        kern = functools.partial(qiddm_fused_kernel,
                                 n_reps=N, n_layers=L, tb=tb, S=S, D_pad=D_pad)
        out = pl.pallas_call(
            kern,
            out_shape=jax.ShapeDtypeStruct((B_pad, D_pad), jnp.float32),
            grid=(B_pad // tb,),
            in_specs=[
                pl.BlockSpec((tb, n_q), lambda i: (i, 0)),                # theta
                pl.BlockSpec((n_q, 2 * S), lambda i: (0, 0)),             # bsh2
                pl.BlockSpec((N, 1, 2 * S), lambda i: (0, 0, 0)),         # ucol2
                pl.BlockSpec((n_mat, 2 * S, 2 * S), lambda i: (0, 0, 0)), # u2s
                pl.BlockSpec((2 * S, n_q), lambda i: (0, 0)),             # zsign2
                pl.BlockSpec((2 * S, D_pad), lambda i: (0, 0)),           # zw2
                pl.BlockSpec((1, D_pad), lambda i: (0, 0)),               # b_up
            ],
            out_specs=pl.BlockSpec((tb, D_pad), lambda i: (i, 0)),
            compiler_params=pltpu.CompilerParams(
                dimension_semantics=("parallel",),
                vmem_limit_bytes=32 * 1024 * 1024),
        )(theta0, self.bsh2, self.ucol2, self.u2s, self.zsign2,
          self.zw2, self.b_up_pad)
        out = out[:B, :self.input_dim]
        return out.reshape(b, c, w, h)

    # ---------------- pure-JAX mirror of the fused kernel ----------------
    def forward_ref(self, x):
        b, c, w, h = x.shape
        theta = self._pca(x.reshape(b, -1).astype(jnp.float32))
        S = self.S
        out = None
        for rep in range(self.N):
            psi = self.ucol2[rep]
            if self.L > 1:
                ang = theta @ self.bsh2
                d1, d2 = jnp.cos(ang), jnp.sin(ang)
                for layer in range(1, self.L):
                    psi_swap = jnp.concatenate([psi[:, S:], psi[:, :S]], axis=-1)
                    t = d1 * psi + d2 * psi_swap
                    k = rep * (self.L - 1) + (layer - 1)
                    psi = t @ self.u2s[k]
            sq = psi * psi
            if rep < self.N - 1:
                theta = sq @ self.zsign2
            else:
                out = sq @ self.zw2 + self.b_up_pad
        out = jnp.broadcast_to(out, (b, self.D_pad))[:, :self.input_dim]
        return out.reshape(b, c, w, h)

    # ------- literal statevector simulation (numpy complex128, no tricks) -------
    def forward_ref_exact(self, x):
        b, c, w, h = x.shape
        theta = np.asarray(self._pca(x.reshape(b, -1).astype(jnp.float32)),
                           dtype=np.float64)
        bsign, zsign = self._np_bsign, self._np_zsign
        w_up_t, b_up = self._np_w_up_t, self._np_b_up
        out = np.zeros((b, self.input_dim), dtype=np.float64)
        for i in range(b):
            th = theta[i]
            for rep in range(self.N):
                psi = np.zeros(self.S, dtype=np.complex128)
                psi[0] = 1.0
                for layer in range(self.L):
                    phase = np.exp(0.5j * (bsign @ th))            # RZ encoding
                    psi = self._u_full[rep, layer] @ (phase * psi)
                th = (np.abs(psi) ** 2) @ zsign
            out[i] = th @ w_up_t + b_up
        return out.reshape(b, c, w, h)


if __name__ == "__main__":
    # small shapes: batch=16, c=1, 8x8 -> input_dim=64 (lane-padded to 128 in the
    # kernel), 4 qubits (S=16), spectrum_layer=2, N=2.  batch=16 gives a 2-step
    # "parallel" grid (exercises the v7x dual-TensorCore path) and keeps the PCA
    # fit valid (batch >= hidden_features).
    b, c, w, h = 16, 1, 8, 8
    input_dim = c * w * h
    hidden_features = 4
    spectrum_layer = 2
    N = 2

    key = jax.random.PRNGKey(0)
    kx, kp = jax.random.split(key)
    x = jax.random.normal(kx, (b, c, w, h), jnp.float32)

    model = QIDDMPallas(input_dim, hidden_features, spectrum_layer, N, kp)
    out = jax.block_until_ready(model.forward(x))
    assert out.shape == (b, c, w, h)

    # 1) tight check vs a pure-JAX mirror of the same (f32, stacked) math
    ref = np.asarray(model.forward_ref(x))
    assert np.allclose(np.asarray(out), ref, atol=1e-4, rtol=1e-4), (
        "Pallas output mismatch vs JAX mirror reference")

    # 2) algorithmic check vs an exact complex128 statevector simulation
    exact = model.forward_ref_exact(x)
    assert np.allclose(np.asarray(out), exact, atol=5e-2, rtol=5e-2), (
        "Pallas output mismatch vs exact statevector reference")

    print("KERNEL_OK")
</pallas_src>

<mosaic_0001>
module attributes {stable_mosaic.version = 11 : i64} {
  func.func @qiddm_fused_kernel(%arg0: i32, %arg1: memref<8x4xf32, #tpu.memory_space<vmem>>, %arg2: memref<4x32xf32, #tpu.memory_space<vmem>>, %arg3: memref<2x1x32xf32, #tpu.memory_space<vmem>>, %arg4: memref<2x32x32xf32, #tpu.memory_space<vmem>>, %arg5: memref<32x4xf32, #tpu.memory_space<vmem>>, %arg6: memref<32x128xf32, #tpu.memory_space<vmem>>, %arg7: memref<1x128xf32, #tpu.memory_space<vmem>>, %arg8: memref<8x128xf32, #tpu.memory_space<vmem>>) attributes {dimension_semantics = [#tpu.dimension_semantics<parallel>], iteration_bounds = array<i64: 2>, scalar_prefetch = 0 : i64, scratch_operands = 0 : i64, tpu.core_type = #tpu.core_type<tc>, window_params = [{transform_indices = @transform_0, window_bounds = array<i64: 8, 4>}, {pipeline_mode = #tpu.pipeline_mode<synchronous>, transform_indices = @transform_1, window_bounds = array<i64: 4, 32>}, {pipeline_mode = #tpu.pipeline_mode<synchronous>, transform_indices = @transform_2, window_bounds = array<i64: 2, 1, 32>}, {pipeline_mode = #tpu.pipeline_mode<synchronous>, transform_indices = @transform_3, window_bounds = array<i64: 2, 32, 32>}, {pipeline_mode = #tpu.pipeline_mode<synchronous>, transform_indices = @transform_4, window_bounds = array<i64: 32, 4>}, {pipeline_mode = #tpu.pipeline_mode<synchronous>, transform_indices = @transform_5, window_bounds = array<i64: 32, 128>}, {pipeline_mode = #tpu.pipeline_mode<synchronous>, transform_indices = @transform_6, window_bounds = array<i64: 1, 128>}, {transform_indices = @transform_7, window_bounds = array<i64: 8, 128>}]} {
    %c0 = arith.constant 0 : index
    %c0_0 = arith.constant 0 : index
    %0 = vector.load %arg1[%c0, %c0_0] : memref<8x4xf32, #tpu.memory_space<vmem>>, vector<8x4xf32>
    %c0_1 = arith.constant 0 : index
    %c0_2 = arith.constant 0 : index
    %1 = vector.load %arg2[%c0_1, %c0_2] : memref<4x32xf32, #tpu.memory_space<vmem>>, vector<4x32xf32>
    %c0_3 = arith.constant 0 : index
    %c0_4 = arith.constant 0 : index
    %2 = vector.load %arg5[%c0_3, %c0_4] : memref<32x4xf32, #tpu.memory_space<vmem>>, vector<32x4xf32>
    %c0_5 = arith.constant 0 : index
    %c0_6 = arith.constant 0 : index
    %c0_7 = arith.constant 0 : index
    %3 = vector.load %arg3[%c0_5, %c0_6, %c0_7] : memref<2x1x32xf32, #tpu.memory_space<vmem>>, vector<1x1x32xf32>
    %4 = vector.shape_cast %3 : vector<1x1x32xf32> to vector<1x32xf32>
    %cst = arith.constant dense<0.000000e+00> : vector<8x32xf32>
    %5 = tpu.matmul %0, %1, %cst {dimension_numbers = #tpu.dot_dimension_numbers<[1], [0], [0], [1], [0, 0, 1, 1], [], []>} : vector<8x4xf32>, vector<4x32xf32>, vector<8x32xf32> -> vector<8x32xf32>
    %6 = math.cos %5 : vector<8x32xf32>
    %7 = math.sin %5 : vector<8x32xf32>
    %8 = vector.extract_strided_slice %4 {offsets = [0, 16], sizes = [1, 16], strides = [1, 1]} : vector<1x32xf32> to vector<1x16xf32>
    %9 = vector.extract_strided_slice %4 {offsets = [0, 0], sizes = [1, 16], strides = [1, 1]} : vector<1x32xf32> to vector<1x16xf32>
    %10 = tpu.concatenate %8, %9 in 1 : vector<1x16xf32>, vector<1x16xf32> -> vector<1x32xf32>
    %11 = vector.broadcast %4 : vector<1x32xf32> to vector<8x32xf32>
    %12 = arith.mulf %6, %11 : vector<8x32xf32>
    %13 = vector.broadcast %10 : vector<1x32xf32> to vector<8x32xf32>
    %14 = arith.mulf %7, %13 : vector<8x32xf32>
    %15 = arith.addf %12, %14 : vector<8x32xf32>
    %c0_8 = arith.constant 0 : index
    %c0_9 = arith.constant 0 : index
    %c0_10 = arith.constant 0 : index
    %16 = vector.load %arg4[%c0_8, %c0_9, %c0_10] : memref<2x32x32xf32, #tpu.memory_space<vmem>>, vector<1x32x32xf32>
    %17 = vector.shape_cast %16 : vector<1x32x32xf32> to vector<32x32xf32>
    %cst_11 = arith.constant dense<0.000000e+00> : vector<8x32xf32>
    %18 = tpu.matmul %15, %17, %cst_11 {dimension_numbers = #tpu.dot_dimension_numbers<[1], [0], [0], [1], [0, 0, 1, 1], [], []>} : vector<8x32xf32>, vector<32x32xf32>, vector<8x32xf32> -> vector<8x32xf32>
    %19 = arith.mulf %18, %18 : vector<8x32xf32>
    %cst_12 = arith.constant dense<0.000000e+00> : vector<8x4xf32>
    %20 = tpu.matmul %19, %2, %cst_12 {dimension_numbers = #tpu.dot_dimension_numbers<[1], [0], [0], [1], [0, 0, 1, 1], [], []>} : vector<8x32xf32>, vector<32x4xf32>, vector<8x4xf32> -> vector<8x4xf32>
    %c1 = arith.constant 1 : index
    %c0_13 = arith.constant 0 : index
    %c0_14 = arith.constant 0 : index
    %21 = vector.load %arg3[%c1, %c0_13, %c0_14] : memref<2x1x32xf32, #tpu.memory_space<vmem>>, vector<1x1x32xf32>
    %22 = vector.shape_cast %21 : vector<1x1x32xf32> to vector<1x32xf32>
    %cst_15 = arith.constant dense<0.000000e+00> : vector<8x32xf32>
    %23 = tpu.matmul %20, %1, %cst_15 {dimension_numbers = #tpu.dot_dimension_numbers<[1], [0], [0], [1], [0, 0, 1, 1], [], []>} : vector<8x4xf32>, vector<4x32xf32>, vector<8x32xf32> -> vector<8x32xf32>
    %24 = math.cos %23 : vector<8x32xf32>
    %25 = math.sin %23 : vector<8x32xf32>
    %26 = vector.extract_strided_slice %22 {offsets = [0, 16], sizes = [1, 16], strides = [1, 1]} : vector<1x32xf32> to vector<1x16xf32>
    %27 = vector.extract_strided_slice %22 {offsets = [0, 0], sizes = [1, 16], strides = [1, 1]} : vector<1x32xf32> to vector<1x16xf32>
    %28 = tpu.concatenate %26, %27 in 1 : vector<1x16xf32>, vector<1x16xf32> -> vector<1x32xf32>
    %29 = vector.broadcast %22 : vector<1x32xf32> to vector<8x32xf32>
    %30 = arith.mulf %24, %29 : vector<8x32xf32>
    %31 = vector.broadcast %28 : vector<1x32xf32> to vector<8x32xf32>
    %32 = arith.mulf %25, %31 : vector<8x32xf32>
    %33 = arith.addf %30, %32 : vector<8x32xf32>
    %c1_16 = arith.constant 1 : index
    %c0_17 = arith.constant 0 : index
    %c0_18 = arith.constant 0 : index
    %34 = vector.load %arg4[%c1_16, %c0_17, %c0_18] : memref<2x32x32xf32, #tpu.memory_space<vmem>>, vector<1x32x32xf32>
    %35 = vector.shape_cast %34 : vector<1x32x32xf32> to vector<32x32xf32>
    %cst_19 = arith.constant dense<0.000000e+00> : vector<8x32xf32>
    %36 = tpu.matmul %33, %35, %cst_19 {dimension_numbers = #tpu.dot_dimension_numbers<[1], [0], [0], [1], [0, 0, 1, 1], [], []>} : vector<8x32xf32>, vector<32x32xf32>, vector<8x32xf32> -> vector<8x32xf32>
    %37 = arith.mulf %36, %36 : vector<8x32xf32>
    %c0_20 = arith.constant 0 : index
    %c0_21 = arith.constant 0 : index
    %38 = vector.load %arg6[%c0_20, %c0_21] : memref<32x128xf32, #tpu.memory_space<vmem>>, vector<32x128xf32>
    %cst_22 = arith.constant dense<0.000000e+00> : vector<8x128xf32>
    %39 = tpu.matmul %37, %38, %cst_22 {dimension_numbers = #tpu.dot_dimension_numbers<[1], [0], [0], [1], [0, 0, 1, 1], [], []>} : vector<8x32xf32>, vector<32x128xf32>, vector<8x128xf32> -> vector<8x128xf32>
    %c0_23 = arith.constant 0 : index
    %c0_24 = arith.constant 0 : index
    %40 = vector.load %arg7[%c0_23, %c0_24] : memref<1x128xf32, #tpu.memory_space<vmem>>, vector<1x128xf32>
    %41 = vector.broadcast %40 : vector<1x128xf32> to vector<8x128xf32>
    %42 = arith.addf %39, %41 : vector<8x128xf32>
    %c0_25 = arith.constant 0 : index
    %c0_26 = arith.constant 0 : index
    %43 = vector.load %arg8[%c0_25, %c0_26] : memref<8x128xf32, #tpu.memory_space<vmem>>, vector<8x128xf32>
    tpu.vector_store %arg8[%c0_25, %c0_26], %42 {strides = array<i32>} : memref<8x128xf32, #tpu.memory_space<vmem>>, vector<8x128xf32>,
    return
  }
  func.func @transform_0(%arg0: i32) -> (i32, i32) {
    %c0_i32 = arith.constant 0 : i32
    %c0_i32_0 = arith.constant 0 : i32
    return %arg0, %c0_i32 : i32, i32
  }
  func.func @transform_1(%arg0: i32) -> (i32, i32) {
    %c0_i32 = arith.constant 0 : i32
    %c0_i32_0 = arith.constant 0 : i32
    %c0_i32_1 = arith.constant 0 : i32
    return %c0_i32, %c0_i32_0 : i32, i32
  }
  func.func @transform_2(%arg0: i32) -> (i32, i32, i32) {
    %c0_i32 = arith.constant 0 : i32
    %c0_i32_0 = arith.constant 0 : i32
    %c0_i32_1 = arith.constant 0 : i32
    %c0_i32_2 = arith.constant 0 : i32
    return %c0_i32, %c0_i32_0, %c0_i32_1 : i32, i32, i32
  }
  func.func @transform_3(%arg0: i32) -> (i32, i32, i32) {
    %c0_i32 = arith.constant 0 : i32
    %c0_i32_0 = arith.constant 0 : i32
    %c0_i32_1 = arith.constant 0 : i32
    %c0_i32_2 = arith.constant 0 : i32
    return %c0_i32, %c0_i32_0, %c0_i32_1 : i32, i32, i32
  }
  func.func @transform_4(%arg0: i32) -> (i32, i32) {
    %c0_i32 = arith.constant 0 : i32
    %c0_i32_0 = arith.constant 0 : i32
    %c0_i32_1 = arith.constant 0 : i32
    return %c0_i32, %c0_i32_0 : i32, i32
  }
  func.func @transform_5(%arg0: i32) -> (i32, i32) {
    %c0_i32 = arith.constant 0 : i32
    %c0_i32_0 = arith.constant 0 : i32
    %c0_i32_1 = arith.constant 0 : i32
    return %c0_i32, %c0_i32_0 : i32, i32
  }
  func.func @transform_6(%arg0: i32) -> (i32, i32) {
    %c0_i32 = arith.constant 0 : i32
    %c0_i32_0 = arith.constant 0 : i32
    %c0_i32_1 = arith.constant 0 : i32
    return %c0_i32, %c0_i32_0 : i32, i32
  }
  func.func @transform_7(%arg0: i32) -> (i32, i32) {
    %c0_i32 = arith.constant 0 : i32
    %c0_i32_0 = arith.constant 0 : i32
    return %arg0, %c0_i32 : i32, i32
  }
}

</mosaic_0001>

<llo_original>
// kernel: tpu_custom_call.1
$region0: #{tpu_custom_call.1}
  #allocation0 [shape = 'u32[]', space=smem, size = 0x4, offset = 0x4, fixed_abs, tag = 'smem constant byte address 0x4 - core index']
  #allocation1 [shape = 'u32[144,128]{1,0:T(1,128)}', space=vmem, size = 0x12000, scoped, tag = 'internal scratch']
  %s0 = inlined_call_operand.vmem [shape: f32[16,4], index: 0, kind: input, shape index: {}]
  %s1 = inlined_call_operand.hbm [shape: f32[4,32], index: 1, kind: input, shape index: {}]
  %s2 = inlined_call_operand.vmem [shape: f32[2,1,32], index: 2, kind: input, shape index: {}]
  %s3 = inlined_call_operand.vmem [shape: f32[2,32,32], index: 3, kind: input, shape index: {}]
  %s4 = inlined_call_operand.vmem [shape: f32[32,4], index: 4, kind: input, shape index: {}]
  %s5 = inlined_call_operand.hbm [shape: f32[32,128], index: 5, kind: input, shape index: {}]
  %s6 = inlined_call_operand.vmem [shape: f32[1,128], index: 6, kind: input, shape index: {}]
  %s7 = inlined_call_operand.hbm [shape: f32[16,128], index: 7, kind: output, shape index: {}]
  %s8 = sld [smem:[#allocation0]]
  $region69: #{tpu_custom_call.1} parent=0
    _
  %s10 = ssub.s32 1, %s8
  %s11 = scalar_select 0, %s10, %s8
  $region1: #{tpu_custom_call.1} parent=0
    #allocation2 [shape = 'u8[2048]{0}', space=vmem, size = 0x800, scoped, tag = 'input window, operand 1, single buffered']
    #allocation3 [shape = 's32[2]{0}', space=sflag, size = 0x8, scoped, tag = 'scoped memory for tpu_custom_call.1']
    #allocation4 [shape = 's32[2]{0}', space=sflag, size = 0x8, scoped, tag = 'scoped memory for tpu_custom_call.1']
    #allocation5 [shape = 'u8[16384]{0}', space=vmem, size = 0x4000, scoped, tag = 'input window, operand 5, single buffered']
    #allocation6 [shape = 's32[1]{0}', space=sflag, size = 0x4, scoped, tag = 'scoped memory for tpu_custom_call.1']
    #allocation7 [shape = 'u8[8192]{0}', space=vmem, size = 0x2000, scoped, tag = 'output window, operand 0']
    %12 = vsyncpa [#allocation3], 0
    %13 = vsyncpa [#allocation6], 0
    %14 = vsyncpa [#allocation4], 0
    %s15 = scalar_lea.sflag [#allocation4], 1
    %16 = vsyncpa %s15, 0
    loop: start=0, step=1, limit=4
    $region2: #{tpu_custom_call.1} parent=1 // loop_pre_header
      _
    $region3: #{tpu_custom_call.1} parent=1 // loop_header
      %s18 = sphi 0, %s22
      %p19 = scmp.ge.s32.totalorder %s18, 4
      %s28 = sphi 0, %s30
      %s31 = sphi 0, %s28
      %s32 = sphi 0, %s31
      %s48 = sphi 0, %s32
      %s52 = sphi 0, %s52
      %s54 = sphi 0, %s52
      %s55 = sphi 0, %s54
      %s69 = sphi 0, %s55
      %s73 = sphi 0, %s73
      %s75 = sphi 0, %s73
      %s76 = sphi 0, %s75
      %s90 = sphi 0, %s76
      %s94 = sphi 0, %s94
      %s96 = sphi 0, %s94
      %s97 = sphi 0, %s96
      %s111 = sphi 0, %s97
      %s115 = sphi 0, %s115
      %s117 = sphi 0, %s115
      %s118 = sphi 0, %s117
      %s132 = sphi 0, %s118
      %s136 = sphi 0, %s136
      %s138 = sphi 0, %s136
      %s139 = sphi 0, %s138
      %s153 = sphi 0, %s139
      %s157 = sphi 0, %s157
      %s159 = sphi 0, %s157
      %s160 = sphi 0, %s159
      %s174 = sphi 0, %s160
      %s180 = sphi 0, %s182
      %s183 = sphi 0, %s180
      %s184 = sphi 0, %s183
      %s200 = sphi 0, %s184
    $region4: #{tpu_custom_call.1} parent=1 // loop_header_branch
      %21 = sbr.rel (%p19) target = $region8
    $region5: #{tpu_custom_call.1} parent=1 // loop_body
      %s23 = ssub.s32 %s18, 1
      %s24 = ssub.s32 %s18, 2
      %s25 = sadd.s32 %s18, 1
      %s26 = ssub.s32 %s18, %s25
      %p27 = scmp.eq.s32.totalorder %s26, 0
      %s29 = sadd.s32 %s28, 1
      %s30 = scalar_select %p27, %s28, %s29
      %p33 = pneg %p27
      %p34 = scmp.eq.s32.totalorder %s18, 1
      %p35 = por %p33, %p34
      %p36 = scmp.ne.s32.totalorder %s28, %s31
      %p37 = scmp.eq.s32.totalorder %s18, 0
      %p38 = por %p36, %p37
      %p39 = scmp.ne.s32.totalorder %s28, %s31
      %p40 = scmp.eq.s32.totalorder %s23, 1
      %p41 = por %p39, %p40
      %p42 = scmp.ne.s32.totalorder %s31, %s32
      %p43 = scmp.eq.s32.totalorder %s23, 0
      %p44 = por %p42, %p43
      %p45 = scmp.ne.s32.totalorder %s31, %s32
      %p46 = scmp.eq.s32.totalorder %s24, 1
      %p47 = por %p45, %p46
      %p49 = scmp.ne.s32.totalorder %s32, %s48
      %p50 = scmp.eq.s32.totalorder %s24, 0
      %p51 = por %p49, %p50
      %s53 = sadd.s32 %s52, 1
      %p56 = scmp.eq.s32.totalorder %s18, 1
      %p57 = scmp.ne.s32.totalorder %s52, %s54
      %p58 = scmp.eq.s32.totalorder %s18, 0
      %p59 = por %p57, %p58
      %p60 = scmp.ne.s32.totalorder %s52, %s54
      %p61 = scmp.eq.s32.totalorder %s23, 1
      %p62 = por %p60, %p61
      %p63 = scmp.ne.s32.totalorder %s54, %s55
      %p64 = scmp.eq.s32.totalorder %s23, 0
      %p65 = por %p63, %p64
      %p66 = scmp.ne.s32.totalorder %s54, %s55
      %p67 = scmp.eq.s32.totalorder %s24, 1
      %p68 = por %p66, %p67
      %p70 = scmp.ne.s32.totalorder %s55, %s69
      %p71 = scmp.eq.s32.totalorder %s24, 0
      %p72 = por %p70, %p71
      %s74 = sadd.s32 %s73, 1
      %p77 = scmp.eq.s32.totalorder %s18, 1
      %p78 = scmp.ne.s32.totalorder %s73, %s75
      %p79 = scmp.eq.s32.totalorder %s18, 0
      %p80 = por %p78, %p79
      %p81 = scmp.ne.s32.totalorder %s73, %s75
      %p82 = scmp.eq.s32.totalorder %s23, 1
      %p83 = por %p81, %p82
      %p84 = scmp.ne.s32.totalorder %s75, %s76
      %p85 = scmp.eq.s32.totalorder %s23, 0
      %p86 = por %p84, %p85
      %p87 = scmp.ne.s32.totalorder %s75, %s76
      %p88 = scmp.eq.s32.totalorder %s24, 1
      %p89 = por %p87, %p88
      %p91 = scmp.ne.s32.totalorder %s76, %s90
      %p92 = scmp.eq.s32.totalorder %s24, 0
      %p93 = por %p91, %p92
      %s95 = sadd.s32 %s94, 1
      %p98 = scmp.eq.s32.totalorder %s18, 1
      %p99 = scmp.ne.s32.totalorder %s94, %s96
      %p100 = scmp.eq.s32.totalorder %s18, 0
      %p101 = por %p99, %p100
      %p102 = scmp.ne.s32.totalorder %s94, %s96
      %p103 = scmp.eq.s32.totalorder %s23, 1
      %p104 = por %p102, %p103
      %p105 = scmp.ne.s32.totalorder %s96, %s97
      %p106 = scmp.eq.s32.totalorder %s23, 0
      %p107 = por %p105, %p106
      %p108 = scmp.ne.s32.totalorder %s96, %s97
      %p109 = scmp.eq.s32.totalorder %s24, 1
      %p110 = por %p108, %p109
      %p112 = scmp.ne.s32.totalorder %s97, %s111
      %p113 = scmp.eq.s32.totalorder %s24, 0
      %p114 = por %p112, %p113
      %s116 = sadd.s32 %s115, 1
      %p119 = scmp.eq.s32.totalorder %s18, 1
      %p120 = scmp.ne.s32.totalorder %s115, %s117
      %p121 = scmp.eq.s32.totalorder %s18, 0
      %p122 = por %p120, %p121
      %p123 = scmp.ne.s32.totalorder %s115, %s117
      %p124 = scmp.eq.s32.totalorder %s23, 1
      %p125 = por %p123, %p124
      %p126 = scmp.ne.s32.totalorder %s117, %s118
      %p127 = scmp.eq.s32.totalorder %s23, 0
      %p128 = por %p126, %p127
      %p129 = scmp.ne.s32.totalorder %s117, %s118
      %p130 = scmp.eq.s32.totalorder %s24, 1
      %p131 = por %p129, %p130
      %p133 = scmp.ne.s32.totalorder %s118, %s132
      %p134 = scmp.eq.s32.totalorder %s24, 0
      %p135 = por %p133, %p134
      %s137 = sadd.s32 %s136, 1
      %p140 = scmp.eq.s32.totalorder %s18, 1
      %p141 = scmp.ne.s32.totalorder %s136, %s138
      %p142 = scmp.eq.s32.totalorder %s18, 0
      %p143 = por %p141, %p142
      %p144 = scmp.ne.s32.totalorder %s136, %s138
      %p145 = scmp.eq.s32.totalorder %s23, 1
      %p146 = por %p144, %p145
      %p147 = scmp.ne.s32.totalorder %s138, %s139
      %p148 = scmp.eq.s32.totalorder %s23, 0
      %p149 = por %p147, %p148
      %p150 = scmp.ne.s32.totalorder %s138, %s139
      %p151 = scmp.eq.s32.totalorder %s24, 1
      %p152 = por %p150, %p151
      %p154 = scmp.ne.s32.totalorder %s139, %s153
      %p155 = scmp.eq.s32.totalorder %s24, 0
      %p156 = por %p154, %p155
      %s158 = sadd.s32 %s157, 1
      %p161 = scmp.eq.s32.totalorder %s18, 1
      %p162 = scmp.ne.s32.totalorder %s157, %s159
      %p163 = scmp.eq.s32.totalorder %s18, 0
      %p164 = por %p162, %p163
      %p165 = scmp.ne.s32.totalorder %s157, %s159
      %p166 = scmp.eq.s32.totalorder %s23, 1
      %p167 = por %p165, %p166
      %p168 = scmp.ne.s32.totalorder %s159, %s160
      %p169 = scmp.eq.s32.totalorder %s23, 0
      %p170 = por %p168, %p169
      %p171 = scmp.ne.s32.totalorder %s159, %s160
      %p172 = scmp.eq.s32.totalorder %s24, 1
      %p173 = por %p171, %p172
      %p175 = scmp.ne.s32.totalorder %s160, %s174
      %p176 = scmp.eq.s32.totalorder %s24, 0
      %p177 = por %p175, %p176
      %s178 = ssub.s32 %s18, %s25
      %p179 = scmp.eq.s32.totalorder %s178, 0
      %s181 = sadd.s32 %s180, 1
      %s182 = scalar_select %p179, %s180, %s181
      %p185 = pneg %p179
      %p186 = scmp.eq.s32.totalorder %s18, 1
      %p187 = por %p185, %p186
      %p188 = scmp.ne.s32.totalorder %s180, %s183
      %p189 = scmp.eq.s32.totalorder %s18, 0
      %p190 = por %p188, %p189
      %p191 = scmp.ne.s32.totalorder %s180, %s183
      %p192 = scmp.eq.s32.totalorder %s23, 1
      %p193 = por %p191, %p192
      %p194 = scmp.ne.s32.totalorder %s183, %s184
      %p195 = scmp.eq.s32.totalorder %s23, 0
      %p196 = por %p194, %p195
      %p197 = scmp.ne.s32.totalorder %s183, %s184
      %p198 = scmp.eq.s32.totalorder %s24, 1
      %p199 = por %p197, %p198
      %p201 = scmp.ne.s32.totalorder %s184, %s200
      %p202 = scmp.eq.s32.totalorder %s24, 0
      %p203 = por %p201, %p202
      %p204 = scmp.le.s32.totalorder 1, %s18
      %p205 = scmp.lt.s32.totalorder %s18, 3
      %p206 = pnand %p204, %p205
      %p207 = pneg %p206
      // Predicated region
      $region9: #{tpu_custom_call.1} parent=5 // pred_check
        _
      $region10: #{tpu_custom_call.1} parent=5 // pred_check_branch
        %209 = sbr.rel (%p206) target = $region12
      $region11: #{tpu_custom_call.1} parent=5 // pred_region
        %s210 = ssub.s32 %s18, 1
        // Predicated region
        $region13: #{tpu_custom_call.1} parent=11 // pred_check
          %p211 = pneg %p65
        $region14: #{tpu_custom_call.1} parent=11 // pred_check_branch
          %213 = sbr.rel (%p211) target = $region16
        $region15: #{tpu_custom_call.1} parent=11 // pred_region
          %s215 = ssub.s32 64, 64
          %216 = vsyncadd [#allocation3], %s215
          %s218 = sshll.u32 [#allocation2], 4
          %s219 = int_to_ptr.vmem [resolvable:$true] %s218
          %221 = dma.hbm_to_vmem [thread:$0]  %s1, 64, %s219, [#allocation3]
        $region16: #{tpu_custom_call.1} parent=11 // pred_fallthru
          _
        // Predicated region
        $region17: #{tpu_custom_call.1} parent=11 // pred_check
          %p222 = pneg %p86
        $region18: #{tpu_custom_call.1} parent=11 // pred_check_branch
          %224 = sbr.rel (%p222) target = $region20
        $region19: #{tpu_custom_call.1} parent=11 // pred_region
          _
        $region20: #{tpu_custom_call.1} parent=11 // pred_fallthru
          _
        // Predicated region
        $region21: #{tpu_custom_call.1} parent=11 // pred_check
          %p225 = pneg %p107
        $region22: #{tpu_custom_call.1} parent=11 // pred_check_branch
          %227 = sbr.rel (%p225) target = $region24
        $region23: #{tpu_custom_call.1} parent=11 // pred_region
          _
        $region24: #{tpu_custom_call.1} parent=11 // pred_fallthru
          _
        // Predicated region
        $region25: #{tpu_custom_call.1} parent=11 // pred_check
          %p228 = pneg %p128
        $region26: #{tpu_custom_call.1} parent=11 // pred_check_branch
          %230 = sbr.rel (%p228) target = $region28
        $region27: #{tpu_custom_call.1} parent=11 // pred_region
          _
        $region28: #{tpu_custom_call.1} parent=11 // pred_fallthru
          _
        // Predicated region
        $region29: #{tpu_custom_call.1} parent=11 // pred_check
          %p231 = pneg %p149
        $region30: #{tpu_custom_call.1} parent=11 // pred_check_branch
          %233 = sbr.rel (%p231) target = $region32
        $region31: #{tpu_custom_call.1} parent=11 // pred_region
          %s235 = ssub.s32 512, 512
          %236 = vsyncadd [#allocation6], %s235
          %s237 = sshll.u32 [#allocation5], 4
          %s238 = int_to_ptr.vmem [resolvable:$true] %s237
          %243 = dma.hbm_to_vmem [thread:$0]  %s5, 512, %s238, [#allocation6], 128, 128, 8
        $region32: #{tpu_custom_call.1} parent=11 // pred_fallthru
          _
        // Predicated region
        $region33: #{tpu_custom_call.1} parent=11 // pred_check
          %p244 = pneg %p170
        $region34: #{tpu_custom_call.1} parent=11 // pred_check_branch
          %246 = sbr.rel (%p244) target = $region36
        $region35: #{tpu_custom_call.1} parent=11 // pred_region
          _
        $region36: #{tpu_custom_call.1} parent=11 // pred_fallthru
          _
      $region12: #{tpu_custom_call.1} parent=5 // pred_fallthru
        _
      %p247 = scmp.lt.s32.totalorder %s18, 2
      // Predicated region
      $region37: #{tpu_custom_call.1} parent=5 // pred_check
        %p248 = pneg %p247
      $region38: #{tpu_custom_call.1} parent=5 // pred_check_branch
        %250 = sbr.rel (%p248) target = $region40
      $region39: #{tpu_custom_call.1} parent=5 // pred_region
        // Predicated region
        $region41: #{tpu_custom_call.1} parent=39 // pred_check
          %p251 = pneg %p38
        $region42: #{tpu_custom_call.1} parent=39 // pred_check_branch
          %253 = sbr.rel (%p251) target = $region44
        $region43: #{tpu_custom_call.1} parent=39 // pred_region
          %p254 = scmp.lt.s32.totalorder %s18, 1
          %s255 = scalar_select %p254, %s18, 1
          %s256 = smul.addr %s255, 8
          %s257 = scalar_lea.vmem %s0, %s256
        $region44: #{tpu_custom_call.1} parent=39 // pred_fallthru
          _
      $region40: #{tpu_custom_call.1} parent=5 // pred_fallthru
        _
      %p258 = scmp.le.s32.totalorder 1, %s18
      %p259 = scmp.lt.s32.totalorder %s18, 3
      %p260 = pnand %p258, %p259
      %p261 = pneg %p260
      // Predicated region
      $region45: #{tpu_custom_call.1} parent=5 // pred_check
        _
      $region46: #{tpu_custom_call.1} parent=5 // pred_check_branch
        %263 = sbr.rel (%p260) target = $region48
      $region47: #{tpu_custom_call.1} parent=5 // pred_region
        %s264 = ssub.s32 %s18, 1
        // Predicated region
        $region49: #{tpu_custom_call.1} parent=47 // pred_check
          %p265 = pneg %p65
        $region50: #{tpu_custom_call.1} parent=47 // pred_check_branch
          %267 = sbr.rel (%p265) target = $region52
        $region51: #{tpu_custom_call.1} parent=47 // pred_region
          %268 = dma.done [#allocation3], 64
        $region52: #{tpu_custom_call.1} parent=47 // pred_fallthru
          _
        // Predicated region
        $region53: #{tpu_custom_call.1} parent=47 // pred_check
          %p269 = pneg %p149
        $region54: #{tpu_custom_call.1} parent=47 // pred_check_branch
          %271 = sbr.rel (%p269) target = $region56
        $region55: #{tpu_custom_call.1} parent=47 // pred_region
          %272 = dma.done [#allocation6], 512
        $region56: #{tpu_custom_call.1} parent=47 // pred_fallthru
          _
        %p273 = scmp.lt.s32.totalorder %s23, 1
        %s274 = scalar_select %p273, %s23, 1
        %s275 = smul.addr %s274, 8
        %s276 = scalar_lea.vmem %s0, %s275
        %p277 = pneg %p44
        %p278 = pneg %p41
        %p279 = pneg %p65
        %p280 = pneg %p62
        %p281 = pneg %p86
        %p282 = pneg %p83
        %p283 = pneg %p107
        %p284 = pneg %p104
        %p285 = pneg %p128
        %p286 = pneg %p125
        %p287 = pneg %p149
        %p288 = pneg %p146
        %p289 = pneg %p170
        %p290 = pneg %p167
        %p291 = pneg %p196
        %p292 = pneg %p193
        %s293 = sand.u32 %s183, 1
        %s294 = scalar_lea.sflag [#allocation4], %s293
        %s295 = sand.u32 %s183, 1
        %s296 = smul.addr %s295, 8
        %s297 = scalar_lea.vmem [#allocation7], %s296
        %p298 = scmp.lt.s32.totalorder %s23, 1
        %s299 = scalar_select %p298, %s23, 1
        %s300 = smul.addr %s299, 8
        %s301 = scalar_lea.vmem %s0, %s300
        %v302 = vld [vmem:[%s301] sm:$0xff]
        %v303 = vld [vmem:[#allocation2] sm:$0xf]
        %v304 = vld [vmem:[%s4] sm:$0xff]
        %v305 = vld [vmem:[%s4 + $0x8] sm:$0xff]
        %v306 = vld [vmem:[%s4 + $0x10] sm:$0xff]
        %v307 = vld [vmem:[%s4 + $0x18] sm:$0xff]
        %v308 = vld [vmem:[%s2] sm:$0x1]
        %vm309 = vcmask 31744
        %v311 = vsel %vm309, %v302, 0
        %vm313 = vcmask 1043456
        %v315 = vsel %vm313, %v303, 0
        %317 = vmatprep.subr.mxu0 0.0
        %318 = vmatpush1.msra.mxu0 %v315
        %319 = vmatprep.subr.mxu0 0.0
        %320 = vmatpush1.msra.mxu0 0.0
        %321 = vmatprep.subr.mxu0 0.0
        %322 = vmatpush1.msra.mxu0 0.0
        %323 = vmatprep.subr.mxu0 0.0
        %324 = vmatpush1.msra.mxu0 0.0
        %325 = vmatprep.subr.mxu0 0.0
        %326 = vmatpush1.msra.mxu0 0.0
        %327 = vmatprep.subr.mxu0 0.0
        %328 = vmatpush1.msra.mxu0 0.0
        %329 = vmatprep.subr.mxu0 0.0
        %330 = vmatpush1.msra.mxu0 0.0
        %331 = vmatprep.subr.mxu0 0.0
        %332 = vmatpush1.msra.mxu0 0.0
        %333 = vmatprep.subr.mxu0 0.0
        %334 = vmatpush1.msra.mxu0 0.0
        %335 = vmatprep.subr.mxu0 0.0
        %336 = vmatpush1.msra.mxu0 0.0
        %337 = vmatprep.subr.mxu0 0.0
        %338 = vmatpush1.msra.mxu0 0.0
        %339 = vmatprep.subr.mxu0 0.0
        %340 = vmatpush1.msra.mxu0 0.0
        %341 = vmatprep.subr.mxu0 0.0
        %342 = vmatpush1.msra.mxu0 0.0
        %343 = vmatprep.subr.mxu0 0.0
        %344 = vmatpush1.msra.mxu0 0.0
        %345 = vmatprep.subr.mxu0 0.0
        %346 = vmatpush1.msra.mxu0 0.0
        %347 = vmatprep.subr.mxu0 0.0
        %348 = vmatpush1.msra.mxu0 0.0
        %349 = vmatprep.subr.mxu0 0.0
        %350 = vmatpush1.msra.mxu0 0.0
        %351 = vmatprep.subr.mxu0 0.0
        %352 = vmatpush1.msra.mxu0 0.0
        %353 = vmatprep.subr.mxu0 0.0
        %354 = vmatpush1.msra.mxu0 0.0
        %355 = vmatprep.subr.mxu0 0.0
        %356 = vmatpush1.msra.mxu0 0.0
        %357 = vmatprep.subr.mxu0 0.0
        %358 = vmatpush1.msra.mxu0 0.0
        %359 = vmatprep.subr.mxu0 0.0
        %360 = vmatpush1.msra.mxu0 0.0
        %361 = vmatprep.subr.mxu0 0.0
        %362 = vmatpush1.msra.mxu0 0.0
        %363 = vmatprep.subr.mxu0 0.0
        %364 = vmatpush1.msra.mxu0 0.0
        %365 = vmatprep.subr.mxu0 0.0
        %366 = vmatpush1.msra.mxu0 0.0
        %367 = vmatprep.subr.mxu0 0.0
        %368 = vmatpush1.msra.mxu0 0.0
        %369 = vmatprep.subr.mxu0 0.0
        %370 = vmatpush1.msra.mxu0 0.0
        %371 = vmatprep.subr.mxu0 0.0
        %372 = vmatpush1.msra.mxu0 0.0
        %373 = vmatprep.subr.mxu0 0.0
        %374 = vmatpush1.msra.mxu0 0.0
        %375 = vmatprep.subr.mxu0 0.0
        %376 = vmatpush1.msra.mxu0 0.0
        %377 = vmatprep.subr.mxu0 0.0
        %378 = vmatpush1.msra.mxu0 0.0
        %379 = vmatprep.subr.mxu0 0.0
        %380 = vmatpush1.msra.mxu0 0.0
        %381 = vmatprep.mubr.f32.mxu0 0.0
        %382 = vmatmul.mubr.f32.gmra.mrb[0].mxu0 %v311
        %v383 = vpop.f32.mrb[0].mxu0
        %v384 = vadd.f32 0.0, %v383
        %v385 = vpop.f32.mrb[0].mxu0
        %386 = vdwg.mxu0
        %v387 = vand.u32 2147483647, %v384
        %vm388 = vcmp.le.f32.partialorder %v387, 0.7853982
        %vm389 = vcmp.lt.s32.totalorder %v384, 0
        %v390 = vand.u32 %v384, 2139095040
        %v391 = vshrl.u32 %v390, 23
        %v392 = vsub.s32 %v391, 127
        %v393 = vand.u32 2147483647, %v384
        %v394 = vand.u32 %v393, 8388607
        %v395 = vor.u32 %v394, 8388608
        %v396 = vsub.s32 0, %v395
        %v397 = vadd.s32 %v392, 1
        %vm398 = vcmp.gt.s32.totalorder %v397, 0
        %v399 = vsel %vm398, %v397, 0
        %v400 = vshrl.u32 %v399, 5
        %v401 = vand.u32 %v399, 31
        %v402 = vsub.s32 32, %v401
        %v403 = vshrl.u32 683565275, %v402
        %v404 = vshll.u32 683565275, %v401
        %v405 = vshrl.u32 2475754826, %v402
        %v406 = vor.u32 %v404, %v405
        %v407 = vshll.u32 2475754826, %v401
        %v408 = vshrl.u32 2131351028, %v402
        %v409 = vor.u32 %v407, %v408
        %v410 = vshll.u32 2131351028, %v401
        %v411 = vshrl.u32 2102212464, %v402
        %v412 = vor.u32 %v410, %v411
        %v413 = vshll.u32 2102212464, %v401
        %v414 = vshrl.u32 920167782, %v402
        %v415 = vor.u32 %v413, %v414
        %v416 = vshll.u32 920167782, %v401
        %v417 = vshrl.u32 1326507024, %v402
        %v418 = vor.u32 %v416, %v417
        %vm419 = vcmp.lt.s32.totalorder %v400, 1
        %vm420 = vcmp.lt.s32.totalorder %v400, 2
        %vm421 = vcmp.lt.s32.totalorder %v400, 3
        %vm422 = vcmp.lt.s32.totalorder %v400, 4
        %v423 = vsel %vm419, %v403, %v406
        %v424 = vsel %vm422, %v412, 2102212464
        %v425 = vsel %vm421, %v409, %v424
        %v426 = vsel %vm420, %v423, %v425
        %v427 = vsel %vm419, %v406, %v409
        %v428 = vsel %vm422, %v415, 920167782
        %v429 = vsel %vm421, %v412, %v428
        %v430 = vsel %vm420, %v427, %v429
        %v431 = vsel %vm419, %v409, %v412
        %v432 = vsel %vm422, %v418, 1326507024
        %v433 = vsel %vm421, %v415, %v432
        %v434 = vsel %vm420, %v431, %v433
        %v435 = vshll.u32 %v395, 8
        %v436 = vmul.u32.u64.compose %v435, %v434
        %v437 = vextract.low.u32 %v436
        %v438 = vextract.high.u32 %v436
        %v439 = vmul.u32.u64.compose %v435, %v430
        %v440 = vextract.low.u32 %v439
        %v441 = vextract.high.u32 %v439
        %v442 = vmul.u32 %v435, %v426
        %v443 = vadd.s32 %v438, %v440
        %vm444 = vc.u32 %v438, %v440
        %v445 = vadd.s32 %v441, 1
        %v446 = vsel %vm444, %v445, %v441
        %v447 = vadd.s32 %v442, %v446
        %v448 = vadd.s32 %v447, 536870912
        %v449 = vshrl.u32 %v448, 30
        %v450 = vshll.u32 %v449, 30
        %v451 = vsub.s32 %v447, %v450
        %vm452 = vcmp.lt.s32.totalorder %v451, 0
        %v453 = vsub.s32 0, %v451
        %v454 = vsel %vm452, %v453, %v451
        %v455 = vclz %v454
        %v456 = vsub.s32 %v455, 2
        %vm457 = vcmp.gt.s32.totalorder 0, %v456
        %v458 = vsel %vm457, 0, %v456
        %v459 = vsub.s32 32, %v458
        %v460 = vshll.u32 %v451, %v458
        %v461 = vshrl.u32 %v443, %v459
        %v462 = vor.u32 %v460, %v461
        %v463 = vsub.s32 4294967266, %v458
        %v464 = vadd.s32 %v463, 127
        %v465 = vshll.u32 %v464, 23
        %v466 = vor.u32 4788187, %v465
        %v467 = vand.u32 2147483647, %v466
        %v469 = vcvt.s32.f32 %v462
        %v470 = vmul.f32 %v469, %v467
        %v471 = vxor.u32 %v470, 2147483648
        %v472 = vsel %vm389, %v471, %v470
        %v473 = vsub.s32 4, %v449
        %v474 = vsel %vm389, %v473, %v449
        %v475 = vsel %vm388, %v384, %v472
        %v476 = vsel %vm388, 0, %v474
        %v477 = vcosq.f32.pop %v475
        %v478 = vsinq.f32.pop %v475
        %vm479 = vweird.f32 %v384
        %v480 = vand.u32 %v476, 3
        %vm481 = vcmp.lt.s32.totalorder %v480, 2
        %vm482 = vcmp.eq.s32.totalorder %v480, 0
        %v483 = vxor.u32 %v478, 2147483648
        %v484 = vsel %vm482, %v477, %v483
        %vm485 = vcmp.eq.s32.totalorder %v480, 2
        %v486 = vxor.u32 %v477, 2147483648
        %v487 = vsel %vm485, %v486, %v478
        %v488 = vsel %vm481, %v484, %v487
        %v489 = vsel %vm479, nan, %v488
        %v490 = vand.u32 2147483647, %v384
        %vm491 = vcmp.le.f32.partialorder %v490, 0.7853982
        %vm492 = vcmp.lt.s32.totalorder %v384, 0
        %v493 = vand.u32 %v384, 2139095040
        %v494 = vshrl.u32 %v493, 23
        %v495 = vsub.s32 %v494, 127
        %v496 = vand.u32 2147483647, %v384
        %v497 = vand.u32 %v496, 8388607
        %v498 = vor.u32 %v497, 8388608
        %v499 = vsub.s32 0, %v498
        %v500 = vadd.s32 %v495, 1
        %vm501 = vcmp.gt.s32.totalorder %v500, 0
        %v502 = vsel %vm501, %v500, 0
        %v503 = vshrl.u32 %v502, 5
        %v504 = vand.u32 %v502, 31
        %v505 = vsub.s32 32, %v504
        %v506 = vshrl.u32 683565275, %v505
        %v507 = vshll.u32 683565275, %v504
        %v508 = vshrl.u32 2475754826, %v505
        %v509 = vor.u32 %v507, %v508
        %v510 = vshll.u32 2475754826, %v504
        %v511 = vshrl.u32 2131351028, %v505
        %v512 = vor.u32 %v510, %v511
        %v513 = vshll.u32 2131351028, %v504
        %v514 = vshrl.u32 2102212464, %v505
        %v515 = vor.u32 %v513, %v514
        %v516 = vshll.u32 2102212464, %v504
        %v517 = vshrl.u32 920167782, %v505
        %v518 = vor.u32 %v516, %v517
        %v519 = vshll.u32 920167782, %v504
        %v520 = vshrl.u32 1326507024, %v505
        %v521 = vor.u32 %v519, %v520
        %vm522 = vcmp.lt.s32.totalorder %v503, 1
        %vm523 = vcmp.lt.s32.totalorder %v503, 2
        %vm524 = vcmp.lt.s32.totalorder %v503, 3
        %vm525 = vcmp.lt.s32.totalorder %v503, 4
        %v526 = vsel %vm522, %v506, %v509
        %v527 = vsel %vm525, %v515, 2102212464
        %v528 = vsel %vm524, %v512, %v527
        %v529 = vsel %vm523, %v526, %v528
        %v530 = vsel %vm522, %v509, %v512
        %v531 = vsel %vm525, %v518, 920167782
        %v532 = vsel %vm524, %v515, %v531
        %v533 = vsel %vm523, %v530, %v532
        %v534 = vsel %vm522, %v512, %v515
        %v535 = vsel %vm525, %v521, 1326507024
        %v536 = vsel %vm524, %v518, %v535
        %v537 = vsel %vm523, %v534, %v536
        %v538 = vshll.u32 %v498, 8
        %v539 = vmul.u32.u64.compose %v538, %v537
        %v540 = vextract.low.u32 %v539
        %v541 = vextract.high.u32 %v539
        %v542 = vmul.u32.u64.compose %v538, %v533
        %v543 = vextract.low.u32 %v542
        %v544 = vextract.high.u32 %v542
        %v545 = vmul.u32 %v538, %v529
        %v546 = vadd.s32 %v541, %v543
        %vm547 = vc.u32 %v541, %v543
        %v548 = vadd.s32 %v544, 1
        %v549 = vsel %vm547, %v548, %v544
        %v550 = vadd.s32 %v545, %v549
        %v551 = vadd.s32 %v550, 536870912
        %v552 = vshrl.u32 %v551, 30
        %v553 = vshll.u32 %v552, 30
        %v554 = vsub.s32 %v550, %v553
        %vm555 = vcmp.lt.s32.totalorder %v554, 0
        %v556 = vsub.s32 0, %v554
        %v557 = vsel %vm555, %v556, %v554
        %v558 = vclz %v557
        %v559 = vsub.s32 %v558, 2
        %vm560 = vcmp.gt.s32.totalorder 0, %v559
        %v561 = vsel %vm560, 0, %v559
        %v562 = vsub.s32 32, %v561
        %v563 = vshll.u32 %v554, %v561
        %v564 = vshrl.u32 %v546, %v562
        %v565 = vor.u32 %v563, %v564
        %v566 = vsub.s32 4294967266, %v561
        %v567 = vadd.s32 %v566, 127
        %v568 = vshll.u32 %v567, 23
        %v569 = vor.u32 4788187, %v568
        %v570 = vand.u32 2147483647, %v569
        %v572 = vcvt.s32.f32 %v565
        %v573 = vmul.f32 %v572, %v570
        %v574 = vxor.u32 %v573, 2147483648
        %v575 = vsel %vm492, %v574, %v573
        %v576 = vsub.s32 4, %v552
        %v577 = vsel %vm492, %v576, %v552
        %v578 = vsel %vm491, %v384, %v575
        %v579 = vsel %vm491, 0, %v577
        %v580 = vcosq.f32.pop %v578
        %v581 = vsinq.f32.pop %v578
        %vm582 = vweird.f32 %v384
        %v583 = vadd.s32 %v579, 3
        %v584 = vand.u32 %v583, 3
        %vm585 = vcmp.lt.s32.totalorder %v584, 2
        %vm586 = vcmp.eq.s32.totalorder %v584, 0
        %v587 = vxor.u32 %v581, 2147483648
        %v588 = vsel %vm586, %v580, %v587
        %vm589 = vcmp.eq.s32.totalorder %v584, 2
        %v590 = vxor.u32 %v580, 2147483648
        %v591 = vsel %vm589, %v590, %v581
        %v592 = vsel %vm585, %v588, %v591
        %v593 = vsel %vm582, nan, %v592
        %v595 = vlaneseq
        %v596 = vshrl.u32 %v595, 7
        %v597 = vsub.s32 0, %v596
        %v598 = vrot.slane %v308, %v597
        %599 = vrot.lane.b32.xlu0 %v598, 112
        %v600 = vpop.permute.xlu0 %599
        %602 = vrot.lane.b32.xlu0 %v598, 16
        %v603 = vpop.permute.xlu0 %602
        %vm605 = vcmask 130048
        %v606 = vsel %vm605, %v600, %v603
        %v608 = vmul.f32 %v489, %v598
        %v609 = vlaneseq
        %v610 = vshrl.u32 %v609, 7
        %v611 = vsub.s32 0, %v610
        %v612 = vrot.slane %v606, %v611
        %v613 = vmul.f32 %v593, %v612
        %v614 = vadd.f32 %v608, %v613
        %v615 = vld [vmem:[%s3] sm:$0xff]
        %v616 = vld [vmem:[%s3 + $0x8] sm:$0xff]
        %v617 = vld [vmem:[%s3 + $0x10] sm:$0xff]
        %v618 = vld [vmem:[%s3 + $0x18] sm:$0xff]
        %vm619 = vcmask 261120
        %v621 = vsel %vm619, %v614, 0
        %623 = vmatprep.subr.mxu0 0.0
        %624 = vmatpush1.msra.mxu0 %v615
        %625 = vmatprep.subr.mxu0 0.0
        %626 = vmatpush1.msra.mxu0 %v616
        %627 = vmatprep.subr.mxu0 0.0
        %628 = vmatpush1.msra.mxu0 %v617
        %629 = vmatprep.subr.mxu0 0.0
        %630 = vmatpush1.msra.mxu0 %v618
        %631 = vmatprep.subr.mxu0 0.0
        %632 = vmatpush1.msra.mxu0 0.0
        %633 = vmatprep.subr.mxu0 0.0
        %634 = vmatpush1.msra.mxu0 0.0
        %635 = vmatprep.subr.mxu0 0.0
        %636 = vmatpush1.msra.mxu0 0.0
        %637 = vmatprep.subr.mxu0 0.0
        %638 = vmatpush1.msra.mxu0 0.0
        %639 = vmatprep.subr.mxu0 0.0
        %640 = vmatpush1.msra.mxu0 0.0
        %641 = vmatprep.subr.mxu0 0.0
        %642 = vmatpush1.msra.mxu0 0.0
        %643 = vmatprep.subr.mxu0 0.0
        %644 = vmatpush1.msra.mxu0 0.0
        %645 = vmatprep.subr.mxu0 0.0
        %646 = vmatpush1.msra.mxu0 0.0
        %647 = vmatprep.subr.mxu0 0.0
        %648 = vmatpush1.msra.mxu0 0.0
        %649 = vmatprep.subr.mxu0 0.0
        %650 = vmatpush1.msra.mxu0 0.0
        %651 = vmatprep.subr.mxu0 0.0
        %652 = vmatpush1.msra.mxu0 0.0
        %653 = vmatprep.subr.mxu0 0.0
        %654 = vmatpush1.msra.mxu0 0.0
        %655 = vmatprep.subr.mxu0 0.0
        %656 = vmatpush1.msra.mxu0 0.0
        %657 = vmatprep.subr.mxu0 0.0
        %658 = vmatpush1.msra.mxu0 0.0
        %659 = vmatprep.subr.mxu0 0.0
        %660 = vmatpush1.msra.mxu0 0.0
        %661 = vmatprep.subr.mxu0 0.0
        %662 = vmatpush1.msra.mxu0 0.0
        %663 = vmatprep.subr.mxu0 0.0
        %664 = vmatpush1.msra.mxu0 0.0
        %665 = vmatprep.subr.mxu0 0.0
        %666 = vmatpush1.msra.mxu0 0.0
        %667 = vmatprep.subr.mxu0 0.0
        %668 = vmatpush1.msra.mxu0 0.0
        %669 = vmatprep.subr.mxu0 0.0
        %670 = vmatpush1.msra.mxu0 0.0
        %671 = vmatprep.subr.mxu0 0.0
        %672 = vmatpush1.msra.mxu0 0.0
        %673 = vmatprep.subr.mxu0 0.0
        %674 = vmatpush1.msra.mxu0 0.0
        %675 = vmatprep.subr.mxu0 0.0
        %676 = vmatpush1.msra.mxu0 0.0
        %677 = vmatprep.subr.mxu0 0.0
        %678 = vmatpush1.msra.mxu0 0.0
        %679 = vmatprep.subr.mxu0 0.0
        %680 = vmatpush1.msra.mxu0 0.0
        %681 = vmatprep.subr.mxu0 0.0
        %682 = vmatpush1.msra.mxu0 0.0
        %683 = vmatprep.subr.mxu0 0.0
        %684 = vmatpush1.msra.mxu0 0.0
        %685 = vmatprep.subr.mxu0 0.0
        %686 = vmatpush1.msra.mxu0 0.0
        %687 = vmatprep.mubr.f32.mxu0 0.0
        %688 = vmatmul.mubr.f32.gmra.mrb[0].mxu0 %v621
        %v689 = vpop.f32.mrb[0].mxu0
        %v690 = vadd.f32 0.0, %v689
        %v691 = vpop.f32.mrb[0].mxu0
        %692 = vdwg.mxu0
        %v693 = vmul.f32 %v690, %v690
        %v695 = vsel %vm619, %v693, 0
        %697 = vmatprep.subr.mxu0 0.0
        %698 = vmatpush1.msra.mxu0 %v304
        %699 = vmatprep.subr.mxu0 0.0
        %700 = vmatpush1.msra.mxu0 %v305
        %701 = vmatprep.subr.mxu0 0.0
        %702 = vmatpush1.msra.mxu0 %v306
        %703 = vmatprep.subr.mxu0 0.0
        %704 = vmatpush1.msra.mxu0 %v307
        %705 = vmatprep.subr.mxu0 0.0
        %706 = vmatpush1.msra.mxu0 0.0
        %707 = vmatprep.subr.mxu0 0.0
        %708 = vmatpush1.msra.mxu0 0.0
        %709 = vmatprep.subr.mxu0 0.0
        %710 = vmatpush1.msra.mxu0 0.0
        %711 = vmatprep.subr.mxu0 0.0
        %712 = vmatpush1.msra.mxu0 0.0
        %713 = vmatprep.subr.mxu0 0.0
        %714 = vmatpush1.msra.mxu0 0.0
        %715 = vmatprep.subr.mxu0 0.0
        %716 = vmatpush1.msra.mxu0 0.0
        %717 = vmatprep.subr.mxu0 0.0
        %718 = vmatpush1.msra.mxu0 0.0
        %719 = vmatprep.subr.mxu0 0.0
        %720 = vmatpush1.msra.mxu0 0.0
        %721 = vmatprep.subr.mxu0 0.0
        %722 = vmatpush1.msra.mxu0 0.0
        %723 = vmatprep.subr.mxu0 0.0
        %724 = vmatpush1.msra.mxu0 0.0
        %725 = vmatprep.subr.mxu0 0.0
        %726 = vmatpush1.msra.mxu0 0.0
        %727 = vmatprep.subr.mxu0 0.0
        %728 = vmatpush1.msra.mxu0 0.0
        %729 = vmatprep.subr.mxu0 0.0
        %730 = vmatpush1.msra.mxu0 0.0
        %731 = vmatprep.subr.mxu0 0.0
        %732 = vmatpush1.msra.mxu0 0.0
        %733 = vmatprep.subr.mxu0 0.0
        %734 = vmatpush1.msra.mxu0 0.0
        %735 = vmatprep.subr.mxu0 0.0
        %736 = vmatpush1.msra.mxu0 0.0
        %737 = vmatprep.subr.mxu0 0.0
        %738 = vmatpush1.msra.mxu0 0.0
        %739 = vmatprep.subr.mxu0 0.0
        %740 = vmatpush1.msra.mxu0 0.0
        %741 = vmatprep.subr.mxu0 0.0
        %742 = vmatpush1.msra.mxu0 0.0
        %743 = vmatprep.subr.mxu0 0.0
        %744 = vmatpush1.msra.mxu0 0.0
        %745 = vmatprep.subr.mxu0 0.0
        %746 = vmatpush1.msra.mxu0 0.0
        %747 = vmatprep.subr.mxu0 0.0
        %748 = vmatpush1.msra.mxu0 0.0
        %749 = vmatprep.subr.mxu0 0.0
        %750 = vmatpush1.msra.mxu0 0.0
        %751 = vmatprep.subr.mxu0 0.0
        %752 = vmatpush1.msra.mxu0 0.0
        %753 = vmatprep.subr.mxu0 0.0
        %754 = vmatpush1.msra.mxu0 0.0
        %755 = vmatprep.subr.mxu0 0.0
        %756 = vmatpush1.msra.mxu0 0.0
        %757 = vmatprep.subr.mxu0 0.0
        %758 = vmatpush1.msra.mxu0 0.0
        %759 = vmatprep.subr.mxu0 0.0
        %760 = vmatpush1.msra.mxu0 0.0
        %761 = vmatprep.mubr.f32.mxu0 0.0
        %762 = vmatmul.mubr.f32.gmra.mrb[0].mxu0 %v695
        %v763 = vpop.f32.mrb[0].mxu0
        %v764 = vadd.f32 0.0, %v763
        %v765 = vpop.f32.mrb[0].mxu0
        %766 = vdwg.mxu0
        %s767 = scalar_lea.vmem %s2, 1
        %v768 = vld [vmem:[%s767] sm:$0x1]
        %v770 = vsel %vm309, %v764, 0
        %772 = vmatprep.subr.mxu0 0.0
        %773 = vmatpush1.msra.mxu0 %v315
        %774 = vmatprep.subr.mxu0 0.0
        %775 = vmatpush1.msra.mxu0 0.0
        %776 = vmatprep.subr.mxu0 0.0
        %777 = vmatpush1.msra.mxu0 0.0
        %778 = vmatprep.subr.mxu0 0.0
        %779 = vmatpush1.msra.mxu0 0.0
        %780 = vmatprep.subr.mxu0 0.0
        %781 = vmatpush1.msra.mxu0 0.0
        %782 = vmatprep.subr.mxu0 0.0
        %783 = vmatpush1.msra.mxu0 0.0
        %784 = vmatprep.subr.mxu0 0.0
        %785 = vmatpush1.msra.mxu0 0.0
        %786 = vmatprep.subr.mxu0 0.0
        %787 = vmatpush1.msra.mxu0 0.0
        %788 = vmatprep.subr.mxu0 0.0
        %789 = vmatpush1.msra.mxu0 0.0
        %790 = vmatprep.subr.mxu0 0.0
        %791 = vmatpush1.msra.mxu0 0.0
        %792 = vmatprep.subr.mxu0 0.0
        %793 = vmatpush1.msra.mxu0 0.0
        %794 = vmatprep.subr.mxu0 0.0
        %795 = vmatpush1.msra.mxu0 0.0
        %796 = vmatprep.subr.mxu0 0.0
        %797 = vmatpush1.msra.mxu0 0.0
        %798 = vmatprep.subr.mxu0 0.0
        %799 = vmatpush1.msra.mxu0 0.0
        %800 = vmatprep.subr.mxu0 0.0
        %801 = vmatpush1.msra.mxu0 0.0
        %802 = vmatprep.subr.mxu0 0.0
        %803 = vmatpush1.msra.mxu0 0.0
        %804 = vmatprep.subr.mxu0 0.0
        %805 = vmatpush1.msra.mxu0 0.0
        %806 = vmatprep.subr.mxu0 0.0
        %807 = vmatpush1.msra.mxu0 0.0
        %808 = vmatprep.subr.mxu0 0.0
        %809 = vmatpush1.msra.mxu0 0.0
        %810 = vmatprep.subr.mxu0 0.0
        %811 = vmatpush1.msra.mxu0 0.0
        %812 = vmatprep.subr.mxu0 0.0
        %813 = vmatpush1.msra.mxu0 0.0
        %814 = vmatprep.subr.mxu0 0.0
        %815 = vmatpush1.msra.mxu0 0.0
        %816 = vmatprep.subr.mxu0 0.0
        %817 = vmatpush1.msra.mxu0 0.0
        %818 = vmatprep.subr.mxu0 0.0
        %819 = vmatpush1.msra.mxu0 0.0
        %820 = vmatprep.subr.mxu0 0.0
        %821 = vmatpush1.msra.mxu0 0.0
        %822 = vmatprep.subr.mxu0 0.0
        %823 = vmatpush1.msra.mxu0 0.0
        %824 = vmatprep.subr.mxu0 0.0
        %825 = vmatpush1.msra.mxu0 0.0
        %826 = vmatprep.subr.mxu0 0.0
        %827 = vmatpush1.msra.mxu0 0.0
        %828 = vmatprep.subr.mxu0 0.0
        %829 = vmatpush1.msra.mxu0 0.0
        %830 = vmatprep.subr.mxu0 0.0
        %831 = vmatpush1.msra.mxu0 0.0
        %832 = vmatprep.subr.mxu0 0.0
        %833 = vmatpush1.msra.mxu0 0.0
        %834 = vmatprep.subr.mxu0 0.0
        %835 = vmatpush1.msra.mxu0 0.0
        %836 = vmatprep.mubr.f32.mxu0 0.0
        %837 = vmatmul.mubr.f32.gmra.mrb[0].mxu0 %v770
        %v838 = vpop.f32.mrb[0].mxu0
        %v839 = vadd.f32 0.0, %v838
        %v840 = vpop.f32.mrb[0].mxu0
        %841 = vdwg.mxu0
        %v842 = vand.u32 2147483647, %v839
        %vm843 = vcmp.le.f32.partialorder %v842, 0.7853982
        %vm844 = vcmp.lt.s32.totalorder %v839, 0
        %v845 = vand.u32 %v839, 2139095040
        %v846 = vshrl.u32 %v845, 23
        %v847 = vsub.s32 %v846, 127
        %v848 = vand.u32 2147483647, %v839
        %v849 = vand.u32 %v848, 8388607
        %v850 = vor.u32 %v849, 8388608
        %v851 = vsub.s32 0, %v850
        %v852 = vadd.s32 %v847, 1
        %vm853 = vcmp.gt.s32.totalorder %v852, 0
        %v854 = vsel %vm853, %v852, 0
        %v855 = vshrl.u32 %v854, 5
        %v856 = vand.u32 %v854, 31
        %v857 = vsub.s32 32, %v856
        %v858 = vshrl.u32 683565275, %v857
        %v859 = vshll.u32 683565275, %v856
        %v860 = vshrl.u32 2475754826, %v857
        %v861 = vor.u32 %v859, %v860
        %v862 = vshll.u32 2475754826, %v856
        %v863 = vshrl.u32 2131351028, %v857
        %v864 = vor.u32 %v862, %v863
        %v865 = vshll.u32 2131351028, %v856
        %v866 = vshrl.u32 2102212464, %v857
        %v867 = vor.u32 %v865, %v866
        %v868 = vshll.u32 2102212464, %v856
        %v869 = vshrl.u32 920167782, %v857
        %v870 = vor.u32 %v868, %v869
        %v871 = vshll.u32 920167782, %v856
        %v872 = vshrl.u32 1326507024, %v857
        %v873 = vor.u32 %v871, %v872
        %vm874 = vcmp.lt.s32.totalorder %v855, 1
        %vm875 = vcmp.lt.s32.totalorder %v855, 2
        %vm876 = vcmp.lt.s32.totalorder %v855, 3
        %vm877 = vcmp.lt.s32.totalorder %v855, 4
        %v878 = vsel %vm874, %v858, %v861
        %v879 = vsel %vm877, %v867, 2102212464
        %v880 = vsel %vm876, %v864, %v879
        %v881 = vsel %vm875, %v878, %v880
        %v882 = vsel %vm874, %v861, %v864
        %v883 = vsel %vm877, %v870, 920167782
        %v884 = vsel %vm876, %v867, %v883
        %v885 = vsel %vm875, %v882, %v884
        %v886 = vsel %vm874, %v864, %v867
        %v887 = vsel %vm877, %v873, 1326507024
        %v888 = vsel %vm876, %v870, %v887
        %v889 = vsel %vm875, %v886, %v888
        %v890 = vshll.u32 %v850, 8
        %v891 = vmul.u32.u64.compose %v890, %v889
        %v892 = vextract.low.u32 %v891
        %v893 = vextract.high.u32 %v891
        %v894 = vmul.u32.u64.compose %v890, %v885
        %v895 = vextract.low.u32 %v894
        %v896 = vextract.high.u32 %v894
        %v897 = vmul.u32 %v890, %v881
        %v898 = vadd.s32 %v893, %v895
        %vm899 = vc.u32 %v893, %v895
        %v900 = vadd.s32 %v896, 1
        %v901 = vsel %vm899, %v900, %v896
        %v902 = vadd.s32 %v897, %v901
        %v903 = vadd.s32 %v902, 536870912
        %v904 = vshrl.u32 %v903, 30
        %v905 = vshll.u32 %v904, 30
        %v906 = vsub.s32 %v902, %v905
        %vm907 = vcmp.lt.s32.totalorder %v906, 0
        %v908 = vsub.s32 0, %v906
        %v909 = vsel %vm907, %v908, %v906
        %v910 = vclz %v909
        %v911 = vsub.s32 %v910, 2
        %vm912 = vcmp.gt.s32.totalorder 0, %v911
        %v913 = vsel %vm912, 0, %v911
        %v914 = vsub.s32 32, %v913
        %v915 = vshll.u32 %v906, %v913
        %v916 = vshrl.u32 %v898, %v914
        %v917 = vor.u32 %v915, %v916
        %v918 = vsub.s32 4294967266, %v913
        %v919 = vadd.s32 %v918, 127
        %v920 = vshll.u32 %v919, 23
        %v921 = vor.u32 4788187, %v920
        %v922 = vand.u32 2147483647, %v921
        %v924 = vcvt.s32.f32 %v917
        %v925 = vmul.f32 %v924, %v922
        %v926 = vxor.u32 %v925, 2147483648
        %v927 = vsel %vm844, %v926, %v925
        %v928 = vsub.s32 4, %v904
        %v929 = vsel %vm844, %v928, %v904
        %v930 = vsel %vm843, %v839, %v927
        %v931 = vsel %vm843, 0, %v929
        %v932 = vcosq.f32.pop %v930
        %v933 = vsinq.f32.pop %v930
        %vm934 = vweird.f32 %v839
        %v935 = vand.u32 %v931, 3
        %vm936 = vcmp.lt.s32.totalorder %v935, 2
        %vm937 = vcmp.eq.s32.totalorder %v935, 0
        %v938 = vxor.u32 %v933, 2147483648
        %v939 = vsel %vm937, %v932, %v938
        %vm940 = vcmp.eq.s32.totalorder %v935, 2
        %v941 = vxor.u32 %v932, 2147483648
        %v942 = vsel %vm940, %v941, %v933
        %v943 = vsel %vm936, %v939, %v942
        %v944 = vsel %vm934, nan, %v943
        %v945 = vand.u32 2147483647, %v839
        %vm946 = vcmp.le.f32.partialorder %v945, 0.7853982
        %vm947 = vcmp.lt.s32.totalorder %v839, 0
        %v948 = vand.u32 %v839, 2139095040
        %v949 = vshrl.u32 %v948, 23
        %v950 = vsub.s32 %v949, 127
        %v951 = vand.u32 2147483647, %v839
        %v952 = vand.u32 %v951, 8388607
        %v953 = vor.u32 %v952, 8388608
        %v954 = vsub.s32 0, %v953
        %v955 = vadd.s32 %v950, 1
        %vm956 = vcmp.gt.s32.totalorder %v955, 0
        %v957 = vsel %vm956, %v955, 0
        %v958 = vshrl.u32 %v957, 5
        %v959 = vand.u32 %v957, 31
        %v960 = vsub.s32 32, %v959
        %v961 = vshrl.u32 683565275, %v960
        %v962 = vshll.u32 683565275, %v959
        %v963 = vshrl.u32 2475754826, %v960
        %v964 = vor.u32 %v962, %v963
        %v965 = vshll.u32 2475754826, %v959
        %v966 = vshrl.u32 2131351028, %v960
        %v967 = vor.u32 %v965, %v966
        %v968 = vshll.u32 2131351028, %v959
        %v969 = vshrl.u32 2102212464, %v960
        %v970 = vor.u32 %v968, %v969
        %v971 = vshll.u32 2102212464, %v959
        %v972 = vshrl.u32 920167782, %v960
        %v973 = vor.u32 %v971, %v972
        %v974 = vshll.u32 920167782, %v959
        %v975 = vshrl.u32 1326507024, %v960
        %v976 = vor.u32 %v974, %v975
        %vm977 = vcmp.lt.s32.totalorder %v958, 1
        %vm978 = vcmp.lt.s32.totalorder %v958, 2
        %vm979 = vcmp.lt.s32.totalorder %v958, 3
        %vm980 = vcmp.lt.s32.totalorder %v958, 4
        %v981 = vsel %vm977, %v961, %v964
        %v982 = vsel %vm980, %v970, 2102212464
        %v983 = vsel %vm979, %v967, %v982
        %v984 = vsel %vm978, %v981, %v983
        %v985 = vsel %vm977, %v964, %v967
        %v986 = vsel %vm980, %v973, 920167782
        %v987 = vsel %vm979, %v970, %v986
        %v988 = vsel %vm978, %v985, %v987
        %v989 = vsel %vm977, %v967, %v970
        %v990 = vsel %vm980, %v976, 1326507024
        %v991 = vsel %vm979, %v973, %v990
        %v992 = vsel %vm978, %v989, %v991
        %v993 = vshll.u32 %v953, 8
        %v994 = vmul.u32.u64.compose %v993, %v992
        %v995 = vextract.low.u32 %v994
        %v996 = vextract.high.u32 %v994
        %v997 = vmul.u32.u64.compose %v993, %v988
        %v998 = vextract.low.u32 %v997
        %v999 = vextract.high.u32 %v997
        %v1000 = vmul.u32 %v993, %v984
        %v1001 = vadd.s32 %v996, %v998
        %vm1002 = vc.u32 %v996, %v998
        %v1003 = vadd.s32 %v999, 1
        %v1004 = vsel %vm1002, %v1003, %v999
        %v1005 = vadd.s32 %v1000, %v1004
        %v1006 = vadd.s32 %v1005, 536870912
        %v1007 = vshrl.u32 %v1006, 30
        %v1008 = vshll.u32 %v1007, 30
        %v1009 = vsub.s32 %v1005, %v1008
        %vm1010 = vcmp.lt.s32.totalorder %v1009, 0
        %v1011 = vsub.s32 0, %v1009
        %v1012 = vsel %vm1010, %v1011, %v1009
        %v1013 = vclz %v1012
        %v1014 = vsub.s32 %v1013, 2
        %vm1015 = vcmp.gt.s32.totalorder 0, %v1014
        %v1016 = vsel %vm1015, 0, %v1014
        %v1017 = vsub.s32 32, %v1016
        %v1018 = vshll.u32 %v1009, %v1016
        %v1019 = vshrl.u32 %v1001, %v1017
        %v1020 = vor.u32 %v1018, %v1019
        %v1021 = vsub.s32 4294967266, %v1016
        %v1022 = vadd.s32 %v1021, 127
        %v1023 = vshll.u32 %v1022, 23
        %v1024 = vor.u32 4788187, %v1023
        %v1025 = vand.u32 2147483647, %v1024
        %v1027 = vcvt.s32.f32 %v1020
        %v1028 = vmul.f32 %v1027, %v1025
        %v1029 = vxor.u32 %v1028, 2147483648
        %v1030 = vsel %vm947, %v1029, %v1028
        %v1031 = vsub.s32 4, %v1007
        %v1032 = vsel %vm947, %v1031, %v1007
        %v1033 = vsel %vm946, %v839, %v1030
        %v1034 = vsel %vm946, 0, %v1032
        %v1035 = vcosq.f32.pop %v1033
        %v1036 = vsinq.f32.pop %v1033
        %vm1037 = vweird.f32 %v839
        %v1038 = vadd.s32 %v1034, 3
        %v1039 = vand.u32 %v1038, 3
        %vm1040 = vcmp.lt.s32.totalorder %v1039, 2
        %vm1041 = vcmp.eq.s32.totalorder %v1039, 0
        %v1042 = vxor.u32 %v1036, 2147483648
        %v1043 = vsel %vm1041, %v1035, %v1042
        %vm1044 = vcmp.eq.s32.totalorder %v1039, 2
        %v1045 = vxor.u32 %v1035, 2147483648
        %v1046 = vsel %vm1044, %v1045, %v1036
        %v1047 = vsel %vm1040, %v1043, %v1046
        %v1048 = vsel %vm1037, nan, %v1047
        %v1050 = vlaneseq
        %v1051 = vshrl.u32 %v1050, 7
        %v1052 = vsub.s32 0, %v1051
        %v1053 = vrot.slane %v768, %v1052
        %1054 = vrot.lane.b32.xlu0 %v1053, 112
        %v1055 = vpop.permute.xlu0 %1054
        %1057 = vrot.lane.b32.xlu0 %v1053, 16
        %v1058 = vpop.permute.xlu0 %1057
        %v1060 = vsel %vm605, %v1055, %v1058
        %v1062 = vmul.f32 %v944, %v1053
        %v1063 = vlaneseq
        %v1064 = vshrl.u32 %v1063, 7
        %v1065 = vsub.s32 0, %v1064
        %v1066 = vrot.slane %v1060, %v1065
        %v1067 = vmul.f32 %v1048, %v1066
        %v1068 = vadd.f32 %v1062, %v1067
        %s1069 = scalar_lea.vmem %s3, 32
        %v1070 = vld [vmem:[%s1069] sm:$0xff]
        %v1071 = vld [vmem:[%s1069 + $0x8] sm:$0xff]
        %v1072 = vld [vmem:[%s1069 + $0x10] sm:$0xff]
        %v1073 = vld [vmem:[%s1069 + $0x18] sm:$0xff]
        %v1075 = vsel %vm619, %v1068, 0
        %1077 = vmatprep.subr.mxu0 0.0
        %1078 = vmatpush1.msra.mxu0 %v1070
        %1079 = vmatprep.subr.mxu0 0.0
        %1080 = vmatpush1.msra.mxu0 %v1071
        %1081 = vmatprep.subr.mxu0 0.0
        %1082 = vmatpush1.msra.mxu0 %v1072
        %1083 = vmatprep.subr.mxu0 0.0
        %1084 = vmatpush1.msra.mxu0 %v1073
        %1085 = vmatprep.subr.mxu0 0.0
        %1086 = vmatpush1.msra.mxu0 0.0
        %1087 = vmatprep.subr.mxu0 0.0
        %1088 = vmatpush1.msra.mxu0 0.0
        %1089 = vmatprep.subr.mxu0 0.0
        %1090 = vmatpush1.msra.mxu0 0.0
        %1091 = vmatprep.subr.mxu0 0.0
        %1092 = vmatpush1.msra.mxu0 0.0
        %1093 = vmatprep.subr.mxu0 0.0
        %1094 = vmatpush1.msra.mxu0 0.0
        %1095 = vmatprep.subr.mxu0 0.0
        %1096 = vmatpush1.msra.mxu0 0.0
        %1097 = vmatprep.subr.mxu0 0.0
        %1098 = vmatpush1.msra.mxu0 0.0
        %1099 = vmatprep.subr.mxu0 0.0
        %1100 = vmatpush1.msra.mxu0 0.0
        %1101 = vmatprep.subr.mxu0 0.0
        %1102 = vmatpush1.msra.mxu0 0.0
        %1103 = vmatprep.subr.mxu0 0.0
        %1104 = vmatpush1.msra.mxu0 0.0
        %1105 = vmatprep.subr.mxu0 0.0
        %1106 = vmatpush1.msra.mxu0 0.0
        %1107 = vmatprep.subr.mxu0 0.0
        %1108 = vmatpush1.msra.mxu0 0.0
        %1109 = vmatprep.subr.mxu0 0.0
        %1110 = vmatpush1.msra.mxu0 0.0
        %1111 = vmatprep.subr.mxu0 0.0
        %1112 = vmatpush1.msra.mxu0 0.0
        %1113 = vmatprep.subr.mxu0 0.0
        %1114 = vmatpush1.msra.mxu0 0.0
        %1115 = vmatprep.subr.mxu0 0.0
        %1116 = vmatpush1.msra.mxu0 0.0
        %1117 = vmatprep.subr.mxu0 0.0
        %1118 = vmatpush1.msra.mxu0 0.0
        %1119 = vmatprep.subr.mxu0 0.0
        %1120 = vmatpush1.msra.mxu0 0.0
        %1121 = vmatprep.subr.mxu0 0.0
        %1122 = vmatpush1.msra.mxu0 0.0
        %1123 = vmatprep.subr.mxu0 0.0
        %1124 = vmatpush1.msra.mxu0 0.0
        %1125 = vmatprep.subr.mxu0 0.0
        %1126 = vmatpush1.msra.mxu0 0.0
        %1127 = vmatprep.subr.mxu0 0.0
        %1128 = vmatpush1.msra.mxu0 0.0
        %1129 = vmatprep.subr.mxu0 0.0
        %1130 = vmatpush1.msra.mxu0 0.0
        %1131 = vmatprep.subr.mxu0 0.0
        %1132 = vmatpush1.msra.mxu0 0.0
        %1133 = vmatprep.subr.mxu0 0.0
        %1134 = vmatpush1.msra.mxu0 0.0
        %1135 = vmatprep.subr.mxu0 0.0
        %1136 = vmatpush1.msra.mxu0 0.0
        %1137 = vmatprep.subr.mxu0 0.0
        %1138 = vmatpush1.msra.mxu0 0.0
        %1139 = vmatprep.subr.mxu0 0.0
        %1140 = vmatpush1.msra.mxu0 0.0
        %1141 = vmatprep.mubr.f32.mxu0 0.0
        %1142 = vmatmul.mubr.f32.gmra.mrb[0].mxu0 %v1075
        %v1143 = vpop.f32.mrb[0].mxu0
        %v1144 = vadd.f32 0.0, %v1143
        %v1145 = vpop.f32.mrb[0].mxu0
        %1146 = vdwg.mxu0
        %v1147 = vmul.f32 %v1144, %v1144
        %v1148 = vld [vmem:[#allocation5] sm:$0xff]
        %v1149 = vld [vmem:[#allocation5 + $0x8] sm:$0xff]
        %v1150 = vld [vmem:[#allocation5 + $0x10] sm:$0xff]
        %v1151 = vld [vmem:[#allocation5 + $0x18] sm:$0xff]
        %v1152 = vld [vmem:[%s6] sm:$0x1]
        %v1154 = vlaneseq
        %v1155 = vshrl.u32 %v1154, 7
        %v1156 = vsub.s32 0, %v1155
        %v1157 = vrot.slane %v1152, %v1156
        %v1160 = vsel %vm619, %v1147, 0
        %1162 = vmatprep.subr.mxu0 0.0
        %1163 = vmatpush1.msra.mxu0 %v1148
        %1164 = vmatprep.subr.mxu0 0.0
        %1165 = vmatpush1.msra.mxu0 %v1149
        %1166 = vmatprep.subr.mxu0 0.0
        %1167 = vmatpush1.msra.mxu0 %v1150
        %1168 = vmatprep.subr.mxu0 0.0
        %1169 = vmatpush1.msra.mxu0 %v1151
        %1170 = vmatprep.subr.mxu0 0.0
        %1171 = vmatpush1.msra.mxu0 0.0
        %1172 = vmatprep.subr.mxu0 0.0
        %1173 = vmatpush1.msra.mxu0 0.0
        %1174 = vmatprep.subr.mxu0 0.0
        %1175 = vmatpush1.msra.mxu0 0.0
        %1176 = vmatprep.subr.mxu0 0.0
        %1177 = vmatpush1.msra.mxu0 0.0
        %1178 = vmatprep.subr.mxu0 0.0
        %1179 = vmatpush1.msra.mxu0 0.0
        %1180 = vmatprep.subr.mxu0 0.0
        %1181 = vmatpush1.msra.mxu0 0.0
        %1182 = vmatprep.subr.mxu0 0.0
        %1183 = vmatpush1.msra.mxu0 0.0
        %1184 = vmatprep.subr.mxu0 0.0
        %1185 = vmatpush1.msra.mxu0 0.0
        %1186 = vmatprep.subr.mxu0 0.0
        %1187 = vmatpush1.msra.mxu0 0.0
        %1188 = vmatprep.subr.mxu0 0.0
        %1189 = vmatpush1.msra.mxu0 0.0
        %1190 = vmatprep.subr.mxu0 0.0
        %1191 = vmatpush1.msra.mxu0 0.0
        %1192 = vmatprep.subr.mxu0 0.0
        %1193 = vmatpush1.msra.mxu0 0.0
        %1194 = vmatprep.subr.mxu0 0.0
        %1195 = vmatpush1.msra.mxu0 0.0
        %1196 = vmatprep.subr.mxu0 0.0
        %1197 = vmatpush1.msra.mxu0 0.0
        %1198 = vmatprep.subr.mxu0 0.0
        %1199 = vmatpush1.msra.mxu0 0.0
        %1200 = vmatprep.subr.mxu0 0.0
        %1201 = vmatpush1.msra.mxu0 0.0
        %1202 = vmatprep.subr.mxu0 0.0
        %1203 = vmatpush1.msra.mxu0 0.0
        %1204 = vmatprep.subr.mxu0 0.0
        %1205 = vmatpush1.msra.mxu0 0.0
        %1206 = vmatprep.subr.mxu0 0.0
        %1207 = vmatpush1.msra.mxu0 0.0
        %1208 = vmatprep.subr.mxu0 0.0
        %1209 = vmatpush1.msra.mxu0 0.0
        %1210 = vmatprep.subr.mxu0 0.0
        %1211 = vmatpush1.msra.mxu0 0.0
        %1212 = vmatprep.subr.mxu0 0.0
        %1213 = vmatpush1.msra.mxu0 0.0
        %1214 = vmatprep.subr.mxu0 0.0
        %1215 = vmatpush1.msra.mxu0 0.0
        %1216 = vmatprep.subr.mxu0 0.0
        %1217 = vmatpush1.msra.mxu0 0.0
        %1218 = vmatprep.subr.mxu0 0.0
        %1219 = vmatpush1.msra.mxu0 0.0
        %1220 = vmatprep.subr.mxu0 0.0
        %1221 = vmatpush1.msra.mxu0 0.0
        %1222 = vmatprep.subr.mxu0 0.0
        %1223 = vmatpush1.msra.mxu0 0.0
        %1224 = vmatprep.subr.mxu0 0.0
        %1225 = vmatpush1.msra.mxu0 0.0
        %1226 = vmatprep.mubr.f32.mxu0 0.0
        %1227 = vmatmul.mubr.f32.gmra.mrb[0].mxu0 %v1160
        %v1228 = vpop.f32.mrb[0].mxu0
        %v1229 = vadd.f32 %v1157, %v1228
        %v1230 = vpop.f32.mrb[0].mxu0
        %1231 = vdwg.mxu0
        %1232 = vst [vmem:[%s297] sm:$0xff] %v1229
        %s1233 = sand.u32 %s183, 1
        %s1234 = scalar_lea.sflag [#allocation4], %s1233
        %s1235 = sand.u32 %s183, 1
        %s1236 = smul.addr %s1235, 8
        %s1237 = scalar_lea.vmem [#allocation7], %s1236
        // Predicated region
        $region57: #{tpu_custom_call.1} parent=47 // pred_check
          %p1238 = pneg %p193
        $region58: #{tpu_custom_call.1} parent=47 // pred_check_branch
          %1240 = sbr.rel (%p1238) target = $region60
        $region59: #{tpu_custom_call.1} parent=47 // pred_region
          %s1242 = ssub.s32 128, 128
          %1243 = vsyncadd %s1234, %s1242
          %s1244 = smul.addr %s23, 128
          %s1245 = scalar_lea.hbm %s7, %s1244
          %s1247 = sshll.u32 %s1237, 4
          %s1248 = int_to_ptr.vmem [resolvable:$true] %s1247
          %1250 = dma.vmem_to_hbm [thread:$0]  %s1248, 128, %s1245, %s1234
        $region60: #{tpu_custom_call.1} parent=47 // pred_fallthru
          _
      $region48: #{tpu_custom_call.1} parent=5 // pred_fallthru
        _
      %p1251 = scmp.le.s32.totalorder 2, %s18
      // Predicated region
      $region61: #{tpu_custom_call.1} parent=5 // pred_check
        %p1252 = pneg %p1251
      $region62: #{tpu_custom_call.1} parent=5 // pred_check_branch
        %1254 = sbr.rel (%p1252) target = $region64
      $region63: #{tpu_custom_call.1} parent=5 // pred_region
        %s1255 = ssub.s32 %s18, 2
        // Predicated region
        $region65: #{tpu_custom_call.1} parent=63 // pred_check
          %p1256 = pneg %p199
        $region66: #{tpu_custom_call.1} parent=63 // pred_check_branch
          %1258 = sbr.rel (%p1256) target = $region68
        $region67: #{tpu_custom_call.1} parent=63 // pred_region
          %s1259 = sand.u32 %s184, 1
          %s1260 = scalar_lea.sflag [#allocation4], %s1259
          %s1261 = sand.u32 %s184, 1
          %s1262 = smul.addr %s1261, 8
          %s1263 = scalar_lea.vmem [#allocation7], %s1262
          %1264 = dma.done %s1260, 128
        $region68: #{tpu_custom_call.1} parent=63 // pred_fallthru
          _
      $region64: #{tpu_custom_call.1} parent=5 // pred_fallthru
        _
    $region6: #{tpu_custom_call.1} parent=1 // loop_footer
      %s22 = sadd.s32 1, %s18
    $region7: #{tpu_custom_call.1} parent=1 // loop_footer_branch
      %17 = sbr.rel target = $region3
    $region8: #{tpu_custom_call.1} parent=1 // loop_exit
      _
    %1265 = vsyncpa [#allocation3], 1
    %s1266 = scalar_lea.sflag [#allocation3], 1
    %1267 = vsyncpa %s1266, 1
    %1268 = vsyncpa [#allocation6], 1
    %1269 = vsyncpa [#allocation4], 1
    %s1270 = scalar_lea.sflag [#allocation4], 1
    %1271 = vsyncpa %s1270, 1

</llo_original>
